<compile_context>
chip_gen: v5e
topology: v5e:2x2
jax: 0.10.0
libtpu: 0.0.40
codegen_flags: <defaults>
</compile_context>

<pallas_src>
import numpy as np
import jax
import jax.numpy as jnp
from jax.experimental import pallas as pl
from jax.experimental.pallas import tpu as pltpu


MATMUL_DTYPE = jnp.bfloat16   # MXU operand dtype (accumulation stays f32)


# ----------------------------------------------------------------------------
# Pallas kernel: fused bidirectional LSTM recurrence + dense projection,
# time-chunked over a sequential grid axis (state carried in VMEM scratch).
# ----------------------------------------------------------------------------
def bilstm_kernel(x_ref, mask_ref, wih_ref, whh_ref, bias_ref, wd_ref,
                  y_ref, pre_ref, hseq_ref, hcf_ref, hcbf_ref):
    # x_ref   : [CT*Bp, 2D]  bf16  chunk of (fwd | in-length-reversed bwd) feats
    # mask_ref: [CT*Bp, 1]   f32   (1.0 while t < len, else 0.0)
    # wih_ref : [2D, 8H]     bf16  gate-interleaved block-diag input weights
    # whh_ref : [4H, 8H]     bf16  block-diag hidden weights (c rows are zero)
    # bias_ref: [1, 8H]      f32   (b_ih + b_hh, both directions, interleaved)
    # wd_ref  : [4H, 2H]     bf16  block-diag dense weights (c rows zero)
    # y_ref   : [CT*Bp, 2H]  f32   chunk of (yf | yb_reversed)
    # hcf_ref : [Bp, 4H]     f32   state [h_f | h_b | c_f | c_b]   (persists)
    # hcbf_ref: [Bp, 4H]     bf16  shadow of the state fed to MXU  (persists)
    CTB = x_ref.shape[0]
    Bp, H4 = hcf_ref.shape
    H2 = H4 // 2
    CT = CTB // Bp

    @pl.when(pl.program_id(0) == 0)
    def _init():
        hcf_ref[...] = jnp.zeros_like(hcf_ref)
        hcbf_ref[...] = jnp.zeros_like(hcbf_ref)

    # --- hoisted per-chunk input projection: one MXU matmul, bias folded ---
    pre_ref[...] = (
        jnp.dot(x_ref[...], wih_ref[...], preferred_element_type=jnp.float32)
        + bias_ref[...])

    whh = whh_ref[...]

    # --- recurrence: only hc_bf16 @ W_hh + elementwise on the serial path ---
    def step(t, carry):
        row = pl.multiple_of(t * Bp, Bp)
        gates = (pre_ref[pl.ds(row, Bp), :]
                 + jnp.dot(hcbf_ref[...], whh,
                           preferred_element_type=jnp.float32))      # [Bp, 8H]
        # gate order (i, f, o | g): sigmoid over 6H lanes, tanh over 2H only.
        sig = jax.nn.sigmoid(gates[:, :3 * H2])
        i = sig[:, 0 * H2:1 * H2]        # [i_f | i_b]
        f = sig[:, 1 * H2:2 * H2]        # [f_f | f_b]
        o = sig[:, 2 * H2:3 * H2]        # [o_f | o_b]
        g = jnp.tanh(gates[:, 3 * H2:])  # [g_f | g_b]

        hc_prev = hcf_ref[...]                                       # [Bp, 4H]
        c_new = f * hc_prev[:, H2:] + i * g
        h_new = o * jnp.tanh(c_new)
        hc_new = jnp.concatenate([h_new, c_new], axis=-1)            # lane-dense

        # packed-sequence semantics: freeze state past each sequence length.
        m = mask_ref[pl.ds(row, Bp), :] > 0.5                        # [Bp, 1]
        hc_keep = jnp.where(m, hc_new, hc_prev)
        hcf_ref[...] = hc_keep
        hcbf_ref[...] = hc_keep.astype(hcbf_ref.dtype)
        hseq_ref[pl.ds(row, Bp), :] = jnp.where(m, hc_new, 0.0)      # zero past len
        return carry

    jax.lax.fori_loop(0, CT, step, 0, unroll=True if CT <= 16 else 8)

    # --- per-chunk dense projection + one bulk store (c rows of wd are 0) ---
    y_ref[...] = jnp.dot(hseq_ref[...].astype(wd_ref.dtype), wd_ref[...],
                         preferred_element_type=jnp.float32)


def _run_bilstm_kernel(xcat2d, mask2d, packed, Tpad, Bp, H, CT):
    D2 = xcat2d.shape[1]
    n_chunks = Tpad // CT
    rows_c = CT * Bp

    flops = int(2 * Tpad * Bp * (D2 * 8 * H          # input projection
                                 + 4 * H * 8 * H     # recurrent matmuls
                                 + 4 * H * 2 * H))   # dense epilogue
    transcendentals = int(Tpad * Bp * 10 * H)        # 6H sigmoid + 4H tanh/step
    bytes_accessed = int(
        xcat2d.size * xcat2d.dtype.itemsize + mask2d.size * 4
        + sum(int(np.prod(v.shape)) * v.dtype.itemsize for v in packed.values())
        + Tpad * Bp * 2 * H * 4)

    grid_spec = pltpu.PrefetchScalarGridSpec(
        num_scalar_prefetch=0,
        grid=(n_chunks,),
        in_specs=[
            pl.BlockSpec((rows_c, D2), lambda i: (i, 0)),        # x, time-chunked
            pl.BlockSpec((rows_c, 1), lambda i: (i, 0)),         # mask, chunked
            pl.BlockSpec(packed["wih"].shape, lambda i: (0, 0)),
            pl.BlockSpec(packed["whh"].shape, lambda i: (0, 0)),
            pl.BlockSpec(packed["b"].shape, lambda i: (0, 0)),
            pl.BlockSpec(packed["wd"].shape, lambda i: (0, 0)),
        ],
        out_specs=pl.BlockSpec((rows_c, 2 * H), lambda i: (i, 0)),
        scratch_shapes=[
            pltpu.VMEM((rows_c, 8 * H), jnp.float32),   # per-chunk x@W_ih + b
            pltpu.VMEM((rows_c, 4 * H), jnp.float32),   # per-chunk masked [h|c]
            pltpu.VMEM((Bp, 4 * H), jnp.float32),       # state [h_f|h_b|c_f|c_b]
            pltpu.VMEM((Bp, 4 * H), MATMUL_DTYPE),      # bf16 shadow for h@W_hh
        ],
    )
    return pl.pallas_call(
        bilstm_kernel,
        out_shape=jax.ShapeDtypeStruct((Tpad * Bp, 2 * H), jnp.float32),
        grid_spec=grid_spec,
        compiler_params=pltpu.CompilerParams(
            dimension_semantics=("arbitrary",),       # recurrence carried in scratch
            vmem_limit_bytes=32 * 1024 * 1024),       # safe on v5e/v6e/v7x
        cost_estimate=pl.CostEstimate(
            flops=flops, transcendentals=transcendentals,
            bytes_accessed=bytes_accessed),
    )(xcat2d, mask2d, packed["wih"], packed["whh"], packed["b"], packed["wd"])


# ----------------------------------------------------------------------------
# Weight packing: gate order (i, f, o, g), direction-interleaved block-diagonal
# layout; W_hh / W_dense padded with zero rows for the c half of the fused state.
# ----------------------------------------------------------------------------
def _pack_bilstm_params(params):
    H = params["whh_f"].shape[0]
    D = params["wih_f"].shape[0]
    GATE_ORDER = (0, 1, 3, 2)            # PyTorch (i, f, g, o) -> (i, f, o, g)

    def blk(w, g):
        return w[..., g * H:(g + 1) * H]

    zD = jnp.zeros((D, H), jnp.float32)
    zH = jnp.zeros((H, H), jnp.float32)
    z2H = jnp.zeros((2 * H, H), jnp.float32)

    cols_ih, cols_hh, cols_b = [], [], []
    for g in GATE_ORDER:                 # columns: i_f,i_b,f_f,f_b,o_f,o_b,g_f,g_b
        cols_ih += [jnp.concatenate([blk(params["wih_f"], g), zD], 0),
                    jnp.concatenate([zD, blk(params["wih_b"], g)], 0)]
        # rows of whh: [h_f | h_b | c_f | c_b]; c rows are structurally zero.
        cols_hh += [jnp.concatenate([blk(params["whh_f"], g), zH, z2H], 0),
                    jnp.concatenate([zH, blk(params["whh_b"], g), z2H], 0)]
        cols_b += [blk(params["b_f"], g), blk(params["b_b"], g)]

    wd = params["wd"]                    # [2H, H] (stored as W^T)
    wd_pad = jnp.concatenate(
        [jnp.concatenate([wd[:H, :], zH, z2H], 0),     # cols 0:H  -> yf
         jnp.concatenate([zH, wd[H:, :], z2H], 0)], 1) # cols H:2H -> yb (rev)

    return {
        "wih": jnp.concatenate(cols_ih, 1).astype(MATMUL_DTYPE),   # [2D, 8H]
        "whh": jnp.concatenate(cols_hh, 1).astype(MATMUL_DTYPE),   # [4H, 8H]
        "b":   jnp.concatenate(cols_b, 1).astype(jnp.float32),     # [1, 8H]
        "wd":  wd_pad.astype(MATMUL_DTYPE),                        # [4H, 2H]
    }


# ----------------------------------------------------------------------------
# Forward pass wrapper (glue: embedding lookup, reversal, padding, transposes)
# ----------------------------------------------------------------------------
def bilstm_forward(params, sent, lens, chunk_t=4):
    emb = jnp.take(params["emb"], sent, axis=0)           # [B, T, D] f32
    B, T, D = emb.shape
    H = params["whh_f"].shape[0]
    Bp = max(8, ((B + 7) // 8) * 8)                       # pad batch to sublanes
    padB = Bp - B
    CT = min(chunk_t, T)                                  # time-chunk length
    Tpad = ((T + CT - 1) // CT) * CT
    padT = Tpad - T

    emb_p = jnp.pad(emb, ((0, padB), (0, 0), (0, 0)))
    lens_p = jnp.pad(lens.astype(jnp.int32), (0, padB))   # padded rows: len 0

    t_idx = jnp.arange(T)
    mask = (t_idx[None, :] < lens_p[:, None]).astype(jnp.float32)       # [Bp, T]
    rev_idx = jnp.clip(lens_p[:, None] - 1 - t_idx[None, :], 0, T - 1)  # [Bp, T]

    # backward-direction input: each sequence reversed within its own length
    gather_idx = jnp.broadcast_to(rev_idx[:, :, None], emb_p.shape)
    emb_rev = jnp.take_along_axis(emb_p, gather_idx, axis=1) * mask[:, :, None]

    # time-major, both directions concatenated on the feature axis, time padded
    # to a multiple of the chunk length (padded steps are masked out).
    xf = jnp.transpose(jnp.pad(emb_p, ((0, 0), (0, padT), (0, 0))), (1, 0, 2))
    xb = jnp.transpose(jnp.pad(emb_rev, ((0, 0), (0, padT), (0, 0))), (1, 0, 2))
    xcat2d = jnp.concatenate([xf, xb], axis=-1).reshape(
        Tpad * Bp, 2 * D).astype(MATMUL_DTYPE)
    mask2d = jnp.transpose(jnp.pad(mask, ((0, 0), (0, padT))),
                           (1, 0)).reshape(Tpad * Bp, 1)

    packed = _pack_bilstm_params(params)
    y2d = _run_bilstm_kernel(xcat2d, mask2d, packed, Tpad, Bp, H, CT)

    y = y2d.reshape(Tpad, Bp, 2 * H)[:T]
    yf = jnp.transpose(y[:, :, :H], (1, 0, 2))            # [Bp, T, H]
    yb_rev = jnp.transpose(y[:, :, H:], (1, 0, 2))
    yb_idx = jnp.broadcast_to(rev_idx[:, :, None], yb_rev.shape)
    yb = jnp.take_along_axis(yb_rev, yb_idx, axis=1) * mask[:, :, None]

    # dense = concat(fwd, bwd) @ W^T + b ; padded positions end up == bias,
    # matching pad_packed_sequence (zeros) followed by nn.Linear.
    out = yf + yb + params["bd"][None, None, :]
    return out[:B]


def bilstm_module_forward(params, sent1, lens1, sent2, lens2):
    # mirrors BiLSTM.forward(sent1, lens1, sent2, lens2) — but both sentences
    # go through ONE kernel launch (batch-concatenated) so the serial
    # recurrence is amortized over 2x rows.
    B1, T1 = sent1.shape
    B2, T2 = sent2.shape
    T = max(T1, T2)
    sent = jnp.concatenate(
        [jnp.pad(sent1, ((0, 0), (0, T - T1))),
         jnp.pad(sent2, ((0, 0), (0, T - T2)))], axis=0)
    lens = jnp.concatenate([lens1.astype(jnp.int32), lens2.astype(jnp.int32)], 0)
    out = bilstm_forward(params, sent, lens)
    return out[:B1, :T1], out[B1:, :T2]


# ----------------------------------------------------------------------------
# Pure NumPy reference (PyTorch packed-sequence semantics)
# ----------------------------------------------------------------------------
def _np_sigmoid(x):
    return 1.0 / (1.0 + np.exp(-x))


def reference_forward(params, sent, lens):
    emb_tab = np.asarray(params["emb"], np.float32)
    wih_f = np.asarray(params["wih_f"]); whh_f = np.asarray(params["whh_f"])
    b_f = np.asarray(params["b_f"]).reshape(-1)
    wih_b = np.asarray(params["wih_b"]); whh_b = np.asarray(params["whh_b"])
    b_b = np.asarray(params["b_b"]).reshape(-1)
    wd = np.asarray(params["wd"]); bd = np.asarray(params["bd"])
    sent = np.asarray(sent); lens = np.asarray(lens)
    B, T = sent.shape
    H = whh_f.shape[0]
    emb = emb_tab[sent]
    lstm_out = np.zeros((B, T, 2 * H), np.float32)  # pad_packed -> zeros

    def run(seq, wih, whh, bias):
        h = np.zeros(H, np.float32)
        c = np.zeros(H, np.float32)
        hs = []
        for x in seq:
            gates = x @ wih + h @ whh + bias
            i = _np_sigmoid(gates[0 * H:1 * H])
            f = _np_sigmoid(gates[1 * H:2 * H])
            g = np.tanh(gates[2 * H:3 * H])
            o = _np_sigmoid(gates[3 * H:4 * H])
            c = f * c + i * g
            h = o * np.tanh(c)
            hs.append(h)
        return np.stack(hs) if hs else np.zeros((0, H), np.float32)

    for b in range(B):
        L = int(lens[b])
        lstm_out[b, :L, :H] = run(emb[b, :L], wih_f, whh_f, b_f)
        lstm_out[b, :L, H:] = run(emb[b, :L][::-1], wih_b, whh_b, b_b)[::-1]
    return lstm_out @ wd + bd


# ----------------------------------------------------------------------------
if __name__ == "__main__":
    VOCAB, D, H, B, T = 50, 32, 32, 2, 8

    key = jax.random.PRNGKey(0)
    ks = jax.random.split(key, 12)
    scale = 1.0 / np.sqrt(H)

    def uni(k, shape):
        return jax.random.uniform(k, shape, jnp.float32, -scale, scale)

    params = {
        "emb":   0.1 * jax.random.normal(ks[0], (VOCAB, D), jnp.float32),
        # LSTM weights stored pre-transposed: x @ W_ih [D,4H], h @ W_hh [H,4H]
        "wih_f": uni(ks[1], (D, 4 * H)),
        "whh_f": uni(ks[2], (H, 4 * H)),
        "b_f":   uni(ks[3], (1, 4 * H)),    # b_ih + b_hh combined
        "wih_b": uni(ks[4], (D, 4 * H)),
        "whh_b": uni(ks[5], (H, 4 * H)),
        "b_b":   uni(ks[6], (1, 4 * H)),
        # dense weight stored as W^T: [2H, H]
        "wd":    uni(ks[7], (2 * H, H)),
        "bd":    uni(ks[8], (H,)),
    }

    sent1 = jax.random.randint(ks[9], (B, T), 0, VOCAB, dtype=jnp.int32)
    sent2 = jax.random.randint(ks[10], (B, T), 0, VOCAB, dtype=jnp.int32)
    lens1 = jnp.array([T, 5], dtype=jnp.int32)
    lens2 = jnp.array([6, T], dtype=jnp.int32)

    fwd = jax.jit(bilstm_module_forward)
    out1, out2 = fwd(params, sent1, lens1, sent2, lens2)
    jax.block_until_ready((out1, out2))

    ref1 = reference_forward(params, sent1, lens1)
    ref2 = reference_forward(params, sent2, lens2)
    assert out1.shape == (B, T, H) and out2.shape == (B, T, H)
    # bf16 MXU operands (f32 accumulation) -> slightly looser tolerance
    assert np.allclose(np.asarray(out1), ref1, atol=2e-2, rtol=2e-2)
    assert np.allclose(np.asarray(out2), ref2, atol=2e-2, rtol=2e-2)
    print("KERNEL_OK")
</pallas_src>

<mosaic_0001>
module attributes {stable_mosaic.version = 11 : i64} {
  func.func @bilstm_kernel(%arg0: i32, %arg1: memref<32x64xbf16, #tpu.memory_space<vmem>>, %arg2: memref<32x1xf32, #tpu.memory_space<vmem>>, %arg3: memref<64x256xbf16, #tpu.memory_space<vmem>>, %arg4: memref<128x256xbf16, #tpu.memory_space<vmem>>, %arg5: memref<1x256xf32, #tpu.memory_space<vmem>>, %arg6: memref<128x64xbf16, #tpu.memory_space<vmem>>, %arg7: memref<32x64xf32, #tpu.memory_space<vmem>>, %arg8: memref<32x256xf32, #tpu.memory_space<vmem>>, %arg9: memref<32x128xf32, #tpu.memory_space<vmem>>, %arg10: memref<8x128xf32, #tpu.memory_space<vmem>>, %arg11: memref<8x128xbf16, #tpu.memory_space<vmem>>) attributes {dimension_semantics = [#tpu.dimension_semantics<arbitrary>], iteration_bounds = array<i64: 2>, scalar_prefetch = 0 : i64, scratch_operands = 4 : i64, tpu.core_type = #tpu.core_type<tc>, window_params = [{transform_indices = @transform_0, window_bounds = array<i64: 32, 64>}, {transform_indices = @transform_1, window_bounds = array<i64: 32, 1>}, {pipeline_mode = #tpu.pipeline_mode<synchronous>, transform_indices = @transform_2, window_bounds = array<i64: 64, 256>}, {pipeline_mode = #tpu.pipeline_mode<synchronous>, transform_indices = @transform_3, window_bounds = array<i64: 128, 256>}, {pipeline_mode = #tpu.pipeline_mode<synchronous>, transform_indices = @transform_4, window_bounds = array<i64: 1, 256>}, {pipeline_mode = #tpu.pipeline_mode<synchronous>, transform_indices = @transform_5, window_bounds = array<i64: 128, 64>}, {transform_indices = @transform_6, window_bounds = array<i64: 32, 64>}]} {
    %c0_i32 = arith.constant 0 : i32
    %0 = arith.cmpi eq, %arg0, %c0_i32 : i32
    %1 = arith.extui %0 : i1 to i32
    %c0_i32_0 = arith.constant 0 : i32
    %2 = arith.cmpi ne, %1, %c0_i32_0 : i32
    scf.if %2 {
      %cst_81 = arith.constant 0.000000e+00 : f32
      %184 = vector.broadcast %cst_81 : f32 to vector<8x128xf32>
      %c0_82 = arith.constant 0 : index
      %c0_83 = arith.constant 0 : index
      %185 = vector.load %arg10[%c0_82, %c0_83] : memref<8x128xf32, #tpu.memory_space<vmem>>, vector<8x128xf32>
      tpu.vector_store %arg10[%c0_82, %c0_83], %184 {strides = array<i32>} : memref<8x128xf32, #tpu.memory_space<vmem>>, vector<8x128xf32>,
      %cst_84 = arith.constant 0.000000e+00 : bf16
      %186 = vector.broadcast %cst_84 : bf16 to vector<8x128xbf16>
      %c0_85 = arith.constant 0 : index
      %c0_86 = arith.constant 0 : index
      %187 = vector.load %arg11[%c0_85, %c0_86] : memref<8x128xbf16, #tpu.memory_space<vmem>>, vector<8x128xbf16>
      tpu.vector_store %arg11[%c0_85, %c0_86], %186 {strides = array<i32>} : memref<8x128xbf16, #tpu.memory_space<vmem>>, vector<8x128xbf16>,
    } else {
    }
    %c0 = arith.constant 0 : index
    %c0_1 = arith.constant 0 : index
    %3 = vector.load %arg1[%c0, %c0_1] : memref<32x64xbf16, #tpu.memory_space<vmem>>, vector<32x64xbf16>
    %c0_2 = arith.constant 0 : index
    %c0_3 = arith.constant 0 : index
    %4 = vector.load %arg3[%c0_2, %c0_3] : memref<64x256xbf16, #tpu.memory_space<vmem>>, vector<64x256xbf16>
    %cst = arith.constant dense<0.000000e+00> : vector<32x256xf32>
    %5 = tpu.matmul %3, %4, %cst {dimension_numbers = #tpu.dot_dimension_numbers<[1], [0], [0], [1], [0, 0, 1, 1], [], []>} : vector<32x64xbf16>, vector<64x256xbf16>, vector<32x256xf32> -> vector<32x256xf32>
    %c0_4 = arith.constant 0 : index
    %c0_5 = arith.constant 0 : index
    %6 = vector.load %arg5[%c0_4, %c0_5] : memref<1x256xf32, #tpu.memory_space<vmem>>, vector<1x256xf32>
    %7 = vector.broadcast %6 : vector<1x256xf32> to vector<32x256xf32>
    %8 = arith.addf %5, %7 : vector<32x256xf32>
    %c0_6 = arith.constant 0 : index
    %c0_7 = arith.constant 0 : index
    %9 = vector.load %arg8[%c0_6, %c0_7] : memref<32x256xf32, #tpu.memory_space<vmem>>, vector<32x256xf32>
    tpu.vector_store %arg8[%c0_6, %c0_7], %8 {strides = array<i32>} : memref<32x256xf32, #tpu.memory_space<vmem>>, vector<32x256xf32>,
    %c0_8 = arith.constant 0 : index
    %c0_9 = arith.constant 0 : index
    %10 = vector.load %arg4[%c0_8, %c0_9] : memref<128x256xbf16, #tpu.memory_space<vmem>>, vector<128x256xbf16>
    %c0_i32_10 = arith.constant 0 : i32
    %c8_i32 = arith.constant 8 : i32
    %11 = arith.muli %c0_i32_10, %c8_i32 : i32
    %12 = tpu.assume_multiple %11, 8 : i32
    %13 = arith.index_cast %12 : i32 to index
    %c0_11 = arith.constant 0 : index
    %14 = vector.load %arg8[%13, %c0_11] : memref<32x256xf32, #tpu.memory_space<vmem>>, vector<8x256xf32>
    %c0_12 = arith.constant 0 : index
    %c0_13 = arith.constant 0 : index
    %15 = vector.load %arg11[%c0_12, %c0_13] : memref<8x128xbf16, #tpu.memory_space<vmem>>, vector<8x128xbf16>
    %cst_14 = arith.constant dense<0.000000e+00> : vector<8x256xf32>
    %16 = tpu.matmul %15, %10, %cst_14 {dimension_numbers = #tpu.dot_dimension_numbers<[1], [0], [0], [1], [0, 0, 1, 1], [], []>} : vector<8x128xbf16>, vector<128x256xbf16>, vector<8x256xf32> -> vector<8x256xf32>
    %17 = arith.addf %14, %16 : vector<8x256xf32>
    %18 = vector.extract_strided_slice %17 {offsets = [0, 0], sizes = [8, 192], strides = [1, 1]} : vector<8x256xf32> to vector<8x192xf32>
    %19 = arith.negf %18 : vector<8x192xf32>
    %20 = math.exp %19 : vector<8x192xf32>
    %cst_15 = arith.constant 1.000000e+00 : f32
    %21 = vector.broadcast %cst_15 : f32 to vector<8x192xf32>
    %22 = arith.addf %21, %20 : vector<8x192xf32>
    %23 = arith.divf %21, %22 : vector<8x192xf32>
    %24 = vector.extract_strided_slice %23 {offsets = [0, 0], sizes = [8, 64], strides = [1, 1]} : vector<8x192xf32> to vector<8x64xf32>
    %25 = vector.extract_strided_slice %23 {offsets = [0, 64], sizes = [8, 64], strides = [1, 1]} : vector<8x192xf32> to vector<8x64xf32>
    %26 = vector.extract_strided_slice %23 {offsets = [0, 128], sizes = [8, 64], strides = [1, 1]} : vector<8x192xf32> to vector<8x64xf32>
    %27 = vector.extract_strided_slice %17 {offsets = [0, 192], sizes = [8, 64], strides = [1, 1]} : vector<8x256xf32> to vector<8x64xf32>
    %28 = math.tanh %27 : vector<8x64xf32>
    %c0_16 = arith.constant 0 : index
    %c0_17 = arith.constant 0 : index
    %29 = vector.load %arg10[%c0_16, %c0_17] : memref<8x128xf32, #tpu.memory_space<vmem>>, vector<8x128xf32>
    %30 = vector.extract_strided_slice %29 {offsets = [0, 64], sizes = [8, 64], strides = [1, 1]} : vector<8x128xf32> to vector<8x64xf32>
    %31 = arith.mulf %25, %30 : vector<8x64xf32>
    %32 = arith.mulf %24, %28 : vector<8x64xf32>
    %33 = arith.addf %31, %32 : vector<8x64xf32>
    %34 = math.tanh %33 : vector<8x64xf32>
    %35 = arith.mulf %26, %34 : vector<8x64xf32>
    %36 = tpu.concatenate %35, %33 in 1 : vector<8x64xf32>, vector<8x64xf32> -> vector<8x128xf32>
    %37 = arith.index_cast %12 : i32 to index
    %c0_18 = arith.constant 0 : index
    %38 = vector.load %arg2[%37, %c0_18] : memref<32x1xf32, #tpu.memory_space<vmem>>, vector<8x1xf32>
    %cst_19 = arith.constant 5.000000e-01 : f32
    %39 = vector.broadcast %cst_19 : f32 to vector<8x1xf32>
    %40 = arith.cmpf ogt, %38, %39 : vector<8x1xf32>
    %41 = vector.shape_cast %40 : vector<8x1xi1> to vector<8x1xi1>
    %42 = vector.broadcast %41 : vector<8x1xi1> to vector<8x128xi1>
    %43 = arith.select %42, %36, %29 : vector<8x128xi1>, vector<8x128xf32>
    %c0_20 = arith.constant 0 : index
    %c0_21 = arith.constant 0 : index
    %44 = vector.load %arg10[%c0_20, %c0_21] : memref<8x128xf32, #tpu.memory_space<vmem>>, vector<8x128xf32>
    tpu.vector_store %arg10[%c0_20, %c0_21], %43 {strides = array<i32>} : memref<8x128xf32, #tpu.memory_space<vmem>>, vector<8x128xf32>,
    %45 = arith.truncf %43 : vector<8x128xf32> to vector<8x128xbf16>
    %c0_22 = arith.constant 0 : index
    %c0_23 = arith.constant 0 : index
    %46 = vector.load %arg11[%c0_22, %c0_23] : memref<8x128xbf16, #tpu.memory_space<vmem>>, vector<8x128xbf16>
    tpu.vector_store %arg11[%c0_22, %c0_23], %45 {strides = array<i32>} : memref<8x128xbf16, #tpu.memory_space<vmem>>, vector<8x128xbf16>,
    %cst_24 = arith.constant 0.000000e+00 : f32
    %47 = vector.shape_cast %40 : vector<8x1xi1> to vector<8x1xi1>
    %48 = vector.broadcast %47 : vector<8x1xi1> to vector<8x128xi1>
    %49 = vector.broadcast %cst_24 : f32 to vector<8x128xf32>
    %50 = arith.select %48, %36, %49 : vector<8x128xi1>, vector<8x128xf32>
    %51 = arith.index_cast %12 : i32 to index
    %c0_25 = arith.constant 0 : index
    %52 = vector.load %arg9[%51, %c0_25] : memref<32x128xf32, #tpu.memory_space<vmem>>, vector<8x128xf32>
    tpu.vector_store %arg9[%51, %c0_25], %50 {strides = array<i32>} : memref<32x128xf32, #tpu.memory_space<vmem>>, vector<8x128xf32>,
    %c1_i32 = arith.constant 1 : i32
    %c8_i32_26 = arith.constant 8 : i32
    %53 = arith.muli %c1_i32, %c8_i32_26 : i32
    %54 = tpu.assume_multiple %53, 8 : i32
    %55 = arith.index_cast %54 : i32 to index
    %c0_27 = arith.constant 0 : index
    %56 = vector.load %arg8[%55, %c0_27] : memref<32x256xf32, #tpu.memory_space<vmem>>, vector<8x256xf32>
    %c0_28 = arith.constant 0 : index
    %c0_29 = arith.constant 0 : index
    %57 = vector.load %arg11[%c0_28, %c0_29] : memref<8x128xbf16, #tpu.memory_space<vmem>>, vector<8x128xbf16>
    %cst_30 = arith.constant dense<0.000000e+00> : vector<8x256xf32>
    %58 = tpu.matmul %57, %10, %cst_30 {dimension_numbers = #tpu.dot_dimension_numbers<[1], [0], [0], [1], [0, 0, 1, 1], [], []>} : vector<8x128xbf16>, vector<128x256xbf16>, vector<8x256xf32> -> vector<8x256xf32>
    %59 = arith.addf %56, %58 : vector<8x256xf32>
    %60 = vector.extract_strided_slice %59 {offsets = [0, 0], sizes = [8, 192], strides = [1, 1]} : vector<8x256xf32> to vector<8x192xf32>
    %61 = arith.negf %60 : vector<8x192xf32>
    %62 = math.exp %61 : vector<8x192xf32>
    %cst_31 = arith.constant 1.000000e+00 : f32
    %63 = vector.broadcast %cst_31 : f32 to vector<8x192xf32>
    %64 = arith.addf %63, %62 : vector<8x192xf32>
    %65 = arith.divf %63, %64 : vector<8x192xf32>
    %66 = vector.extract_strided_slice %65 {offsets = [0, 0], sizes = [8, 64], strides = [1, 1]} : vector<8x192xf32> to vector<8x64xf32>
    %67 = vector.extract_strided_slice %65 {offsets = [0, 64], sizes = [8, 64], strides = [1, 1]} : vector<8x192xf32> to vector<8x64xf32>
    %68 = vector.extract_strided_slice %65 {offsets = [0, 128], sizes = [8, 64], strides = [1, 1]} : vector<8x192xf32> to vector<8x64xf32>
    %69 = vector.extract_strided_slice %59 {offsets = [0, 192], sizes = [8, 64], strides = [1, 1]} : vector<8x256xf32> to vector<8x64xf32>
    %70 = math.tanh %69 : vector<8x64xf32>
    %c0_32 = arith.constant 0 : index
    %c0_33 = arith.constant 0 : index
    %71 = vector.load %arg10[%c0_32, %c0_33] : memref<8x128xf32, #tpu.memory_space<vmem>>, vector<8x128xf32>
    %72 = vector.extract_strided_slice %71 {offsets = [0, 64], sizes = [8, 64], strides = [1, 1]} : vector<8x128xf32> to vector<8x64xf32>
    %73 = arith.mulf %67, %72 : vector<8x64xf32>
    %74 = arith.mulf %66, %70 : vector<8x64xf32>
    %75 = arith.addf %73, %74 : vector<8x64xf32>
    %76 = math.tanh %75 : vector<8x64xf32>
    %77 = arith.mulf %68, %76 : vector<8x64xf32>
    %78 = tpu.concatenate %77, %75 in 1 : vector<8x64xf32>, vector<8x64xf32> -> vector<8x128xf32>
    %79 = arith.index_cast %54 : i32 to index
    %c0_34 = arith.constant 0 : index
    %80 = vector.load %arg2[%79, %c0_34] : memref<32x1xf32, #tpu.memory_space<vmem>>, vector<8x1xf32>
    %cst_35 = arith.constant 5.000000e-01 : f32
    %81 = vector.broadcast %cst_35 : f32 to vector<8x1xf32>
    %82 = arith.cmpf ogt, %80, %81 : vector<8x1xf32>
    %83 = vector.shape_cast %82 : vector<8x1xi1> to vector<8x1xi1>
    %84 = vector.broadcast %83 : vector<8x1xi1> to vector<8x128xi1>
    %85 = arith.select %84, %78, %71 : vector<8x128xi1>, vector<8x128xf32>
    %c0_36 = arith.constant 0 : index
    %c0_37 = arith.constant 0 : index
    %86 = vector.load %arg10[%c0_36, %c0_37] : memref<8x128xf32, #tpu.memory_space<vmem>>, vector<8x128xf32>
    tpu.vector_store %arg10[%c0_36, %c0_37], %85 {strides = array<i32>} : memref<8x128xf32, #tpu.memory_space<vmem>>, vector<8x128xf32>,
    %87 = arith.truncf %85 : vector<8x128xf32> to vector<8x128xbf16>
    %c0_38 = arith.constant 0 : index
    %c0_39 = arith.constant 0 : index
    %88 = vector.load %arg11[%c0_38, %c0_39] : memref<8x128xbf16, #tpu.memory_space<vmem>>, vector<8x128xbf16>
    tpu.vector_store %arg11[%c0_38, %c0_39], %87 {strides = array<i32>} : memref<8x128xbf16, #tpu.memory_space<vmem>>, vector<8x128xbf16>,
    %cst_40 = arith.constant 0.000000e+00 : f32
    %89 = vector.shape_cast %82 : vector<8x1xi1> to vector<8x1xi1>
    %90 = vector.broadcast %89 : vector<8x1xi1> to vector<8x128xi1>
    %91 = vector.broadcast %cst_40 : f32 to vector<8x128xf32>
    %92 = arith.select %90, %78, %91 : vector<8x128xi1>, vector<8x128xf32>
    %93 = arith.index_cast %54 : i32 to index
    %c0_41 = arith.constant 0 : index
    %94 = vector.load %arg9[%93, %c0_41] : memref<32x128xf32, #tpu.memory_space<vmem>>, vector<8x128xf32>
    tpu.vector_store %arg9[%93, %c0_41], %92 {strides = array<i32>} : memref<32x128xf32, #tpu.memory_space<vmem>>, vector<8x128xf32>,
    %c2_i32 = arith.constant 2 : i32
    %c8_i32_42 = arith.constant 8 : i32
    %95 = arith.muli %c2_i32, %c8_i32_42 : i32
    %96 = tpu.assume_multiple %95, 8 : i32
    %97 = arith.index_cast %96 : i32 to index
    %c0_43 = arith.constant 0 : index
    %98 = vector.load %arg8[%97, %c0_43] : memref<32x256xf32, #tpu.memory_space<vmem>>, vector<8x256xf32>
    %c0_44 = arith.constant 0 : index
    %c0_45 = arith.constant 0 : index
    %99 = vector.load %arg11[%c0_44, %c0_45] : memref<8x128xbf16, #tpu.memory_space<vmem>>, vector<8x128xbf16>
    %cst_46 = arith.constant dense<0.000000e+00> : vector<8x256xf32>
    %100 = tpu.matmul %99, %10, %cst_46 {dimension_numbers = #tpu.dot_dimension_numbers<[1], [0], [0], [1], [0, 0, 1, 1], [], []>} : vector<8x128xbf16>, vector<128x256xbf16>, vector<8x256xf32> -> vector<8x256xf32>
    %101 = arith.addf %98, %100 : vector<8x256xf32>
    %102 = vector.extract_strided_slice %101 {offsets = [0, 0], sizes = [8, 192], strides = [1, 1]} : vector<8x256xf32> to vector<8x192xf32>
    %103 = arith.negf %102 : vector<8x192xf32>
    %104 = math.exp %103 : vector<8x192xf32>
    %cst_47 = arith.constant 1.000000e+00 : f32
    %105 = vector.broadcast %cst_47 : f32 to vector<8x192xf32>
    %106 = arith.addf %105, %104 : vector<8x192xf32>
    %107 = arith.divf %105, %106 : vector<8x192xf32>
    %108 = vector.extract_strided_slice %107 {offsets = [0, 0], sizes = [8, 64], strides = [1, 1]} : vector<8x192xf32> to vector<8x64xf32>
    %109 = vector.extract_strided_slice %107 {offsets = [0, 64], sizes = [8, 64], strides = [1, 1]} : vector<8x192xf32> to vector<8x64xf32>
    %110 = vector.extract_strided_slice %107 {offsets = [0, 128], sizes = [8, 64], strides = [1, 1]} : vector<8x192xf32> to vector<8x64xf32>
    %111 = vector.extract_strided_slice %101 {offsets = [0, 192], sizes = [8, 64], strides = [1, 1]} : vector<8x256xf32> to vector<8x64xf32>
    %112 = math.tanh %111 : vector<8x64xf32>
    %c0_48 = arith.constant 0 : index
    %c0_49 = arith.constant 0 : index
    %113 = vector.load %arg10[%c0_48, %c0_49] : memref<8x128xf32, #tpu.memory_space<vmem>>, vector<8x128xf32>
    %114 = vector.extract_strided_slice %113 {offsets = [0, 64], sizes = [8, 64], strides = [1, 1]} : vector<8x128xf32> to vector<8x64xf32>
    %115 = arith.mulf %109, %114 : vector<8x64xf32>
    %116 = arith.mulf %108, %112 : vector<8x64xf32>
    %117 = arith.addf %115, %116 : vector<8x64xf32>
    %118 = math.tanh %117 : vector<8x64xf32>
    %119 = arith.mulf %110, %118 : vector<8x64xf32>
    %120 = tpu.concatenate %119, %117 in 1 : vector<8x64xf32>, vector<8x64xf32> -> vector<8x128xf32>
    %121 = arith.index_cast %96 : i32 to index
    %c0_50 = arith.constant 0 : index
    %122 = vector.load %arg2[%121, %c0_50] : memref<32x1xf32, #tpu.memory_space<vmem>>, vector<8x1xf32>
    %cst_51 = arith.constant 5.000000e-01 : f32
    %123 = vector.broadcast %cst_51 : f32 to vector<8x1xf32>
    %124 = arith.cmpf ogt, %122, %123 : vector<8x1xf32>
    %125 = vector.shape_cast %124 : vector<8x1xi1> to vector<8x1xi1>
    %126 = vector.broadcast %125 : vector<8x1xi1> to vector<8x128xi1>
    %127 = arith.select %126, %120, %113 : vector<8x128xi1>, vector<8x128xf32>
    %c0_52 = arith.constant 0 : index
    %c0_53 = arith.constant 0 : index
    %128 = vector.load %arg10[%c0_52, %c0_53] : memref<8x128xf32, #tpu.memory_space<vmem>>, vector<8x128xf32>
    tpu.vector_store %arg10[%c0_52, %c0_53], %127 {strides = array<i32>} : memref<8x128xf32, #tpu.memory_space<vmem>>, vector<8x128xf32>,
    %129 = arith.truncf %127 : vector<8x128xf32> to vector<8x128xbf16>
    %c0_54 = arith.constant 0 : index
    %c0_55 = arith.constant 0 : index
    %130 = vector.load %arg11[%c0_54, %c0_55] : memref<8x128xbf16, #tpu.memory_space<vmem>>, vector<8x128xbf16>
    tpu.vector_store %arg11[%c0_54, %c0_55], %129 {strides = array<i32>} : memref<8x128xbf16, #tpu.memory_space<vmem>>, vector<8x128xbf16>,
    %cst_56 = arith.constant 0.000000e+00 : f32
    %131 = vector.shape_cast %124 : vector<8x1xi1> to vector<8x1xi1>
    %132 = vector.broadcast %131 : vector<8x1xi1> to vector<8x128xi1>
    %133 = vector.broadcast %cst_56 : f32 to vector<8x128xf32>
    %134 = arith.select %132, %120, %133 : vector<8x128xi1>, vector<8x128xf32>
    %135 = arith.index_cast %96 : i32 to index
    %c0_57 = arith.constant 0 : index
    %136 = vector.load %arg9[%135, %c0_57] : memref<32x128xf32, #tpu.memory_space<vmem>>, vector<8x128xf32>
    tpu.vector_store %arg9[%135, %c0_57], %134 {strides = array<i32>} : memref<32x128xf32, #tpu.memory_space<vmem>>, vector<8x128xf32>,
    %c3_i32 = arith.constant 3 : i32
    %c8_i32_58 = arith.constant 8 : i32
    %137 = arith.muli %c3_i32, %c8_i32_58 : i32
    %138 = tpu.assume_multiple %137, 8 : i32
    %139 = arith.index_cast %138 : i32 to index
    %c0_59 = arith.constant 0 : index
    %140 = vector.load %arg8[%139, %c0_59] : memref<32x256xf32, #tpu.memory_space<vmem>>, vector<8x256xf32>
    %c0_60 = arith.constant 0 : index
    %c0_61 = arith.constant 0 : index
    %141 = vector.load %arg11[%c0_60, %c0_61] : memref<8x128xbf16, #tpu.memory_space<vmem>>, vector<8x128xbf16>
    %cst_62 = arith.constant dense<0.000000e+00> : vector<8x256xf32>
    %142 = tpu.matmul %141, %10, %cst_62 {dimension_numbers = #tpu.dot_dimension_numbers<[1], [0], [0], [1], [0, 0, 1, 1], [], []>} : vector<8x128xbf16>, vector<128x256xbf16>, vector<8x256xf32> -> vector<8x256xf32>
    %143 = arith.addf %140, %142 : vector<8x256xf32>
    %144 = vector.extract_strided_slice %143 {offsets = [0, 0], sizes = [8, 192], strides = [1, 1]} : vector<8x256xf32> to vector<8x192xf32>
    %145 = arith.negf %144 : vector<8x192xf32>
    %146 = math.exp %145 : vector<8x192xf32>
    %cst_63 = arith.constant 1.000000e+00 : f32
    %147 = vector.broadcast %cst_63 : f32 to vector<8x192xf32>
    %148 = arith.addf %147, %146 : vector<8x192xf32>
    %149 = arith.divf %147, %148 : vector<8x192xf32>
    %150 = vector.extract_strided_slice %149 {offsets = [0, 0], sizes = [8, 64], strides = [1, 1]} : vector<8x192xf32> to vector<8x64xf32>
    %151 = vector.extract_strided_slice %149 {offsets = [0, 64], sizes = [8, 64], strides = [1, 1]} : vector<8x192xf32> to vector<8x64xf32>
    %152 = vector.extract_strided_slice %149 {offsets = [0, 128], sizes = [8, 64], strides = [1, 1]} : vector<8x192xf32> to vector<8x64xf32>
    %153 = vector.extract_strided_slice %143 {offsets = [0, 192], sizes = [8, 64], strides = [1, 1]} : vector<8x256xf32> to vector<8x64xf32>
    %154 = math.tanh %153 : vector<8x64xf32>
    %c0_64 = arith.constant 0 : index
    %c0_65 = arith.constant 0 : index
    %155 = vector.load %arg10[%c0_64, %c0_65] : memref<8x128xf32, #tpu.memory_space<vmem>>, vector<8x128xf32>
    %156 = vector.extract_strided_slice %155 {offsets = [0, 64], sizes = [8, 64], strides = [1, 1]} : vector<8x128xf32> to vector<8x64xf32>
    %157 = arith.mulf %151, %156 : vector<8x64xf32>
    %158 = arith.mulf %150, %154 : vector<8x64xf32>
    %159 = arith.addf %157, %158 : vector<8x64xf32>
    %160 = math.tanh %159 : vector<8x64xf32>
    %161 = arith.mulf %152, %160 : vector<8x64xf32>
    %162 = tpu.concatenate %161, %159 in 1 : vector<8x64xf32>, vector<8x64xf32> -> vector<8x128xf32>
    %163 = arith.index_cast %138 : i32 to index
    %c0_66 = arith.constant 0 : index
    %164 = vector.load %arg2[%163, %c0_66] : memref<32x1xf32, #tpu.memory_space<vmem>>, vector<8x1xf32>
    %cst_67 = arith.constant 5.000000e-01 : f32
    %165 = vector.broadcast %cst_67 : f32 to vector<8x1xf32>
    %166 = arith.cmpf ogt, %164, %165 : vector<8x1xf32>
    %167 = vector.shape_cast %166 : vector<8x1xi1> to vector<8x1xi1>
    %168 = vector.broadcast %167 : vector<8x1xi1> to vector<8x128xi1>
    %169 = arith.select %168, %162, %155 : vector<8x128xi1>, vector<8x128xf32>
    %c0_68 = arith.constant 0 : index
    %c0_69 = arith.constant 0 : index
    %170 = vector.load %arg10[%c0_68, %c0_69] : memref<8x128xf32, #tpu.memory_space<vmem>>, vector<8x128xf32>
    tpu.vector_store %arg10[%c0_68, %c0_69], %169 {strides = array<i32>} : memref<8x128xf32, #tpu.memory_space<vmem>>, vector<8x128xf32>,
    %171 = arith.truncf %169 : vector<8x128xf32> to vector<8x128xbf16>
    %c0_70 = arith.constant 0 : index
    %c0_71 = arith.constant 0 : index
    %172 = vector.load %arg11[%c0_70, %c0_71] : memref<8x128xbf16, #tpu.memory_space<vmem>>, vector<8x128xbf16>
    tpu.vector_store %arg11[%c0_70, %c0_71], %171 {strides = array<i32>} : memref<8x128xbf16, #tpu.memory_space<vmem>>, vector<8x128xbf16>,
    %cst_72 = arith.constant 0.000000e+00 : f32
    %173 = vector.shape_cast %166 : vector<8x1xi1> to vector<8x1xi1>
    %174 = vector.broadcast %173 : vector<8x1xi1> to vector<8x128xi1>
    %175 = vector.broadcast %cst_72 : f32 to vector<8x128xf32>
    %176 = arith.select %174, %162, %175 : vector<8x128xi1>, vector<8x128xf32>
    %177 = arith.index_cast %138 : i32 to index
    %c0_73 = arith.constant 0 : index
    %178 = vector.load %arg9[%177, %c0_73] : memref<32x128xf32, #tpu.memory_space<vmem>>, vector<8x128xf32>
    tpu.vector_store %arg9[%177, %c0_73], %176 {strides = array<i32>} : memref<32x128xf32, #tpu.memory_space<vmem>>, vector<8x128xf32>,
    %c4_i32 = arith.constant 4 : i32
    %c0_74 = arith.constant 0 : index
    %c0_75 = arith.constant 0 : index
    %179 = vector.load %arg9[%c0_74, %c0_75] : memref<32x128xf32, #tpu.memory_space<vmem>>, vector<32x128xf32>
    %180 = arith.truncf %179 : vector<32x128xf32> to vector<32x128xbf16>
    %c0_76 = arith.constant 0 : index
    %c0_77 = arith.constant 0 : index
    %181 = vector.load %arg6[%c0_76, %c0_77] : memref<128x64xbf16, #tpu.memory_space<vmem>>, vector<128x64xbf16>
    %cst_78 = arith.constant dense<0.000000e+00> : vector<32x64xf32>
    %182 = tpu.matmul %180, %181, %cst_78 {dimension_numbers = #tpu.dot_dimension_numbers<[1], [0], [0], [1], [0, 0, 1, 1], [], []>} : vector<32x128xbf16>, vector<128x64xbf16>, vector<32x64xf32> -> vector<32x64xf32>
    %c0_79 = arith.constant 0 : index
    %c0_80 = arith.constant 0 : index
    %183 = vector.load %arg7[%c0_79, %c0_80] : memref<32x64xf32, #tpu.memory_space<vmem>>, vector<32x64xf32>
    tpu.vector_store %arg7[%c0_79, %c0_80], %182 {strides = array<i32>} : memref<32x64xf32, #tpu.memory_space<vmem>>, vector<32x64xf32>,
    return
  }
  func.func @transform_0(%arg0: i32) -> (i32, i32) {
    %c0_i32 = arith.constant 0 : i32
    %c0_i32_0 = arith.constant 0 : i32
    return %arg0, %c0_i32 : i32, i32
  }
  func.func @transform_1(%arg0: i32) -> (i32, i32) {
    %c0_i32 = arith.constant 0 : i32
    %c0_i32_0 = arith.constant 0 : i32
    return %arg0, %c0_i32 : i32, i32
  }
  func.func @transform_2(%arg0: i32) -> (i32, i32) {
    %c0_i32 = arith.constant 0 : i32
    %c0_i32_0 = arith.constant 0 : i32
    %c0_i32_1 = arith.constant 0 : i32
    return %c0_i32, %c0_i32_0 : i32, i32
  }
  func.func @transform_3(%arg0: i32) -> (i32, i32) {
    %c0_i32 = arith.constant 0 : i32
    %c0_i32_0 = arith.constant 0 : i32
    %c0_i32_1 = arith.constant 0 : i32
    return %c0_i32, %c0_i32_0 : i32, i32
  }
  func.func @transform_4(%arg0: i32) -> (i32, i32) {
    %c0_i32 = arith.constant 0 : i32
    %c0_i32_0 = arith.constant 0 : i32
    %c0_i32_1 = arith.constant 0 : i32
    return %c0_i32, %c0_i32_0 : i32, i32
  }
  func.func @transform_5(%arg0: i32) -> (i32, i32) {
    %c0_i32 = arith.constant 0 : i32
    %c0_i32_0 = arith.constant 0 : i32
    %c0_i32_1 = arith.constant 0 : i32
    return %c0_i32, %c0_i32_0 : i32, i32
  }
  func.func @transform_6(%arg0: i32) -> (i32, i32) {
    %c0_i32 = arith.constant 0 : i32
    %c0_i32_0 = arith.constant 0 : i32
    return %arg0, %c0_i32 : i32, i32
  }
}

</mosaic_0001>

<llo_original>
// kernel: bilstm_module_forward.1
$region0: #{bilstm_module_forward.1}
  #allocation0 [shape = 'u32[]', space=smem, size = 0x4, offset = 0x4, fixed_abs, tag = 'smem constant byte address 0x4 - core index']
  #allocation1 [shape = 'u32[72,128]{1,0:T(1,128)}', space=vmem, size = 0x9000, scoped, tag = 'internal scratch']
  #allocation2 [shape = 'f32[32,256]{1,0:T(8,128)}', space=vmem, size = 0x8000, scoped, tag = 'scratch operand']
  #allocation3 [shape = 'f32[32,128]{1,0:T(8,128)}', space=vmem, size = 0x4000, scoped, tag = 'scratch operand']
  #allocation4 [shape = 'f32[8,128]{1,0:T(8,128)}', space=vmem, size = 0x1000, scoped, tag = 'scratch operand']
  #allocation5 [shape = 'bf16[8,128]{1,0:T(8,128)(2,1)}', space=vmem, size = 0x800, scoped, tag = 'scratch operand']
  %s0 = inlined_call_operand.vmem [shape: bf16[64,64], index: 0, kind: input, shape index: {}]
  %s1 = inlined_call_operand.vmem [shape: f32[64,1], index: 1, kind: input, shape index: {}]
  %s2 = inlined_call_operand.vmem [shape: bf16[64,256], index: 2, kind: input, shape index: {}]
  %s3 = inlined_call_operand.vmem [shape: bf16[128,256], index: 3, kind: input, shape index: {}]
  %s4 = inlined_call_operand.vmem [shape: f32[1,256], index: 4, kind: input, shape index: {}]
  %s5 = inlined_call_operand.vmem [shape: bf16[128,64], index: 5, kind: input, shape index: {}]
  %s6 = inlined_call_operand.vmem [shape: f32[64,64], index: 6, kind: output, shape index: {}]
  %s7 = sld [smem:[#allocation0]]
  $region61: #{bilstm_module_forward.1} parent=0
    _
  %s9 = ssub.s32 1, %s7
  %s10 = scalar_select 0, %s9, %s7
  loop: start=0, step=1, limit=4
  $region2: #{bilstm_module_forward.1} parent=0 // loop_pre_header
    _
  $region3: #{bilstm_module_forward.1} parent=0 // loop_header
    %s12 = sphi 0, %s16
    %p13 = scmp.ge.s32.totalorder %s12, 4
    %s22 = sphi 0, %s24
    %s25 = sphi 0, %s22
    %s26 = sphi 0, %s25
    %s42 = sphi 0, %s26
    %s48 = sphi 0, %s50
    %s51 = sphi 0, %s48
    %s52 = sphi 0, %s51
    %s68 = sphi 0, %s52
    %s72 = sphi 0, %s72
    %s74 = sphi 0, %s72
    %s75 = sphi 0, %s74
    %s89 = sphi 0, %s75
    %s93 = sphi 0, %s93
    %s95 = sphi 0, %s93
    %s96 = sphi 0, %s95
    %s110 = sphi 0, %s96
    %s114 = sphi 0, %s114
    %s116 = sphi 0, %s114
    %s117 = sphi 0, %s116
    %s131 = sphi 0, %s117
    %s135 = sphi 0, %s135
    %s137 = sphi 0, %s135
    %s138 = sphi 0, %s137
    %s152 = sphi 0, %s138
    %s158 = sphi 0, %s160
    %s161 = sphi 0, %s158
    %s162 = sphi 0, %s161
    %s178 = sphi 0, %s162
  $region4: #{bilstm_module_forward.1} parent=0 // loop_header_branch
    %15 = sbr.rel (%p13) target = $region8
  $region5: #{bilstm_module_forward.1} parent=0 // loop_body
    %s17 = ssub.s32 %s12, 1
    %s18 = ssub.s32 %s12, 2
    %s19 = sadd.s32 %s12, 1
    %s20 = ssub.s32 %s12, %s19
    %p21 = scmp.eq.s32.totalorder %s20, 0
    %s23 = sadd.s32 %s22, 1
    %s24 = scalar_select %p21, %s22, %s23
    %p27 = pneg %p21
    %p28 = scmp.eq.s32.totalorder %s12, 1
    %p29 = por %p27, %p28
    %p30 = scmp.ne.s32.totalorder %s22, %s25
    %p31 = scmp.eq.s32.totalorder %s12, 0
    %p32 = por %p30, %p31
    %p33 = scmp.ne.s32.totalorder %s22, %s25
    %p34 = scmp.eq.s32.totalorder %s17, 1
    %p35 = por %p33, %p34
    %p36 = scmp.ne.s32.totalorder %s25, %s26
    %p37 = scmp.eq.s32.totalorder %s17, 0
    %p38 = por %p36, %p37
    %p39 = scmp.ne.s32.totalorder %s25, %s26
    %p40 = scmp.eq.s32.totalorder %s18, 1
    %p41 = por %p39, %p40
    %p43 = scmp.ne.s32.totalorder %s26, %s42
    %p44 = scmp.eq.s32.totalorder %s18, 0
    %p45 = por %p43, %p44
    %s46 = ssub.s32 %s12, %s19
    %p47 = scmp.eq.s32.totalorder %s46, 0
    %s49 = sadd.s32 %s48, 1
    %s50 = scalar_select %p47, %s48, %s49
    %p53 = pneg %p47
    %p54 = scmp.eq.s32.totalorder %s12, 1
    %p55 = por %p53, %p54
    %p56 = scmp.ne.s32.totalorder %s48, %s51
    %p57 = scmp.eq.s32.totalorder %s12, 0
    %p58 = por %p56, %p57
    %p59 = scmp.ne.s32.totalorder %s48, %s51
    %p60 = scmp.eq.s32.totalorder %s17, 1
    %p61 = por %p59, %p60
    %p62 = scmp.ne.s32.totalorder %s51, %s52
    %p63 = scmp.eq.s32.totalorder %s17, 0
    %p64 = por %p62, %p63
    %p65 = scmp.ne.s32.totalorder %s51, %s52
    %p66 = scmp.eq.s32.totalorder %s18, 1
    %p67 = por %p65, %p66
    %p69 = scmp.ne.s32.totalorder %s52, %s68
    %p70 = scmp.eq.s32.totalorder %s18, 0
    %p71 = por %p69, %p70
    %s73 = sadd.s32 %s72, 1
    %p76 = scmp.eq.s32.totalorder %s12, 1
    %p77 = scmp.ne.s32.totalorder %s72, %s74
    %p78 = scmp.eq.s32.totalorder %s12, 0
    %p79 = por %p77, %p78
    %p80 = scmp.ne.s32.totalorder %s72, %s74
    %p81 = scmp.eq.s32.totalorder %s17, 1
    %p82 = por %p80, %p81
    %p83 = scmp.ne.s32.totalorder %s74, %s75
    %p84 = scmp.eq.s32.totalorder %s17, 0
    %p85 = por %p83, %p84
    %p86 = scmp.ne.s32.totalorder %s74, %s75
    %p87 = scmp.eq.s32.totalorder %s18, 1
    %p88 = por %p86, %p87
    %p90 = scmp.ne.s32.totalorder %s75, %s89
    %p91 = scmp.eq.s32.totalorder %s18, 0
    %p92 = por %p90, %p91
    %s94 = sadd.s32 %s93, 1
    %p97 = scmp.eq.s32.totalorder %s12, 1
    %p98 = scmp.ne.s32.totalorder %s93, %s95
    %p99 = scmp.eq.s32.totalorder %s12, 0
    %p100 = por %p98, %p99
    %p101 = scmp.ne.s32.totalorder %s93, %s95
    %p102 = scmp.eq.s32.totalorder %s17, 1
    %p103 = por %p101, %p102
    %p104 = scmp.ne.s32.totalorder %s95, %s96
    %p105 = scmp.eq.s32.totalorder %s17, 0
    %p106 = por %p104, %p105
    %p107 = scmp.ne.s32.totalorder %s95, %s96
    %p108 = scmp.eq.s32.totalorder %s18, 1
    %p109 = por %p107, %p108
    %p111 = scmp.ne.s32.totalorder %s96, %s110
    %p112 = scmp.eq.s32.totalorder %s18, 0
    %p113 = por %p111, %p112
    %s115 = sadd.s32 %s114, 1
    %p118 = scmp.eq.s32.totalorder %s12, 1
    %p119 = scmp.ne.s32.totalorder %s114, %s116
    %p120 = scmp.eq.s32.totalorder %s12, 0
    %p121 = por %p119, %p120
    %p122 = scmp.ne.s32.totalorder %s114, %s116
    %p123 = scmp.eq.s32.totalorder %s17, 1
    %p124 = por %p122, %p123
    %p125 = scmp.ne.s32.totalorder %s116, %s117
    %p126 = scmp.eq.s32.totalorder %s17, 0
    %p127 = por %p125, %p126
    %p128 = scmp.ne.s32.totalorder %s116, %s117
    %p129 = scmp.eq.s32.totalorder %s18, 1
    %p130 = por %p128, %p129
    %p132 = scmp.ne.s32.totalorder %s117, %s131
    %p133 = scmp.eq.s32.totalorder %s18, 0
    %p134 = por %p132, %p133
    %s136 = sadd.s32 %s135, 1
    %p139 = scmp.eq.s32.totalorder %s12, 1
    %p140 = scmp.ne.s32.totalorder %s135, %s137
    %p141 = scmp.eq.s32.totalorder %s12, 0
    %p142 = por %p140, %p141
    %p143 = scmp.ne.s32.totalorder %s135, %s137
    %p144 = scmp.eq.s32.totalorder %s17, 1
    %p145 = por %p143, %p144
    %p146 = scmp.ne.s32.totalorder %s137, %s138
    %p147 = scmp.eq.s32.totalorder %s17, 0
    %p148 = por %p146, %p147
    %p149 = scmp.ne.s32.totalorder %s137, %s138
    %p150 = scmp.eq.s32.totalorder %s18, 1
    %p151 = por %p149, %p150
    %p153 = scmp.ne.s32.totalorder %s138, %s152
    %p154 = scmp.eq.s32.totalorder %s18, 0
    %p155 = por %p153, %p154
    %s156 = ssub.s32 %s12, %s19
    %p157 = scmp.eq.s32.totalorder %s156, 0
    %s159 = sadd.s32 %s158, 1
    %s160 = scalar_select %p157, %s158, %s159
    %p163 = pneg %p157
    %p164 = scmp.eq.s32.totalorder %s12, 1
    %p165 = por %p163, %p164
    %p166 = scmp.ne.s32.totalorder %s158, %s161
    %p167 = scmp.eq.s32.totalorder %s12, 0
    %p168 = por %p166, %p167
    %p169 = scmp.ne.s32.totalorder %s158, %s161
    %p170 = scmp.eq.s32.totalorder %s17, 1
    %p171 = por %p169, %p170
    %p172 = scmp.ne.s32.totalorder %s161, %s162
    %p173 = scmp.eq.s32.totalorder %s17, 0
    %p174 = por %p172, %p173
    %p175 = scmp.ne.s32.totalorder %s161, %s162
    %p176 = scmp.eq.s32.totalorder %s18, 1
    %p177 = por %p175, %p176
    %p179 = scmp.ne.s32.totalorder %s162, %s178
    %p180 = scmp.eq.s32.totalorder %s18, 0
    %p181 = por %p179, %p180
    %p182 = scmp.le.s32.totalorder 1, %s12
    %p183 = scmp.lt.s32.totalorder %s12, 3
    %p184 = pnand %p182, %p183
    %p185 = pneg %p184
    // Predicated region
    $region9: #{bilstm_module_forward.1} parent=5 // pred_check
      _
    $region10: #{bilstm_module_forward.1} parent=5 // pred_check_branch
      %187 = sbr.rel (%p184) target = $region12
    $region11: #{bilstm_module_forward.1} parent=5 // pred_region
      %s188 = ssub.s32 %s12, 1
      // Predicated region
      $region13: #{bilstm_module_forward.1} parent=11 // pred_check
        %p189 = pneg %p85
      $region14: #{bilstm_module_forward.1} parent=11 // pred_check_branch
        %191 = sbr.rel (%p189) target = $region16
      $region15: #{bilstm_module_forward.1} parent=11 // pred_region
        _
      $region16: #{bilstm_module_forward.1} parent=11 // pred_fallthru
        _
      // Predicated region
      $region17: #{bilstm_module_forward.1} parent=11 // pred_check
        %p192 = pneg %p106
      $region18: #{bilstm_module_forward.1} parent=11 // pred_check_branch
        %194 = sbr.rel (%p192) target = $region20
      $region19: #{bilstm_module_forward.1} parent=11 // pred_region
        _
      $region20: #{bilstm_module_forward.1} parent=11 // pred_fallthru
        _
      // Predicated region
      $region21: #{bilstm_module_forward.1} parent=11 // pred_check
        %p195 = pneg %p127
      $region22: #{bilstm_module_forward.1} parent=11 // pred_check_branch
        %197 = sbr.rel (%p195) target = $region24
      $region23: #{bilstm_module_forward.1} parent=11 // pred_region
        _
      $region24: #{bilstm_module_forward.1} parent=11 // pred_fallthru
        _
      // Predicated region
      $region25: #{bilstm_module_forward.1} parent=11 // pred_check
        %p198 = pneg %p148
      $region26: #{bilstm_module_forward.1} parent=11 // pred_check_branch
        %200 = sbr.rel (%p198) target = $region28
      $region27: #{bilstm_module_forward.1} parent=11 // pred_region
        _
      $region28: #{bilstm_module_forward.1} parent=11 // pred_fallthru
        _
    $region12: #{bilstm_module_forward.1} parent=5 // pred_fallthru
      _
    %p201 = scmp.lt.s32.totalorder %s12, 2
    // Predicated region
    $region29: #{bilstm_module_forward.1} parent=5 // pred_check
      %p202 = pneg %p201
    $region30: #{bilstm_module_forward.1} parent=5 // pred_check_branch
      %204 = sbr.rel (%p202) target = $region32
    $region31: #{bilstm_module_forward.1} parent=5 // pred_region
      // Predicated region
      $region33: #{bilstm_module_forward.1} parent=31 // pred_check
        %p205 = pneg %p32
      $region34: #{bilstm_module_forward.1} parent=31 // pred_check_branch
        %207 = sbr.rel (%p205) target = $region36
      $region35: #{bilstm_module_forward.1} parent=31 // pred_region
        %s208 = smul.u32 4, %s12
        %p209 = scmp.lt.s32.totalorder %s208, 7
        %s210 = scalar_select %p209, %s208, 7
        %s211 = smul.addr %s210, 4
        %s212 = scalar_lea.vmem %s0, %s211
        %s213 = smul.u32 4, %s12
      $region36: #{bilstm_module_forward.1} parent=31 // pred_fallthru
        _
      // Predicated region
      $region37: #{bilstm_module_forward.1} parent=31 // pred_check
        %p214 = pneg %p58
      $region38: #{bilstm_module_forward.1} parent=31 // pred_check_branch
        %216 = sbr.rel (%p214) target = $region40
      $region39: #{bilstm_module_forward.1} parent=31 // pred_region
        %s217 = smul.u32 4, %s12
        %p218 = scmp.lt.s32.totalorder %s217, 7
        %s219 = scalar_select %p218, %s217, 7
        %s220 = smul.addr %s219, 8
        %s221 = scalar_lea.vmem %s1, %s220
        %s222 = smul.u32 4, %s12
      $region40: #{bilstm_module_forward.1} parent=31 // pred_fallthru
        _
    $region32: #{bilstm_module_forward.1} parent=5 // pred_fallthru
      _
    %p223 = scmp.le.s32.totalorder 1, %s12
    %p224 = scmp.lt.s32.totalorder %s12, 3
    %p225 = pnand %p223, %p224
    %p226 = pneg %p225
    // Predicated region
    $region41: #{bilstm_module_forward.1} parent=5 // pred_check
      _
    $region42: #{bilstm_module_forward.1} parent=5 // pred_check_branch
      %228 = sbr.rel (%p225) target = $region44
    $region43: #{bilstm_module_forward.1} parent=5 // pred_region
      %s229 = ssub.s32 %s12, 1
      %s230 = smul.u32 4, %s17
      %p231 = scmp.lt.s32.totalorder %s230, 7
      %s232 = scalar_select %p231, %s230, 7
      %s233 = smul.addr %s232, 4
      %s234 = scalar_lea.vmem %s0, %s233
      %p235 = pneg %p38
      %p236 = pneg %p35
      %s237 = smul.u32 4, %s17
      %p238 = scmp.lt.s32.totalorder %s237, 7
      %s239 = scalar_select %p238, %s237, 7
      %s240 = smul.addr %s239, 8
      %s241 = scalar_lea.vmem %s1, %s240
      %p242 = pneg %p64
      %p243 = pneg %p61
      %p244 = pneg %p85
      %p245 = pneg %p82
      %p246 = pneg %p106
      %p247 = pneg %p103
      %p248 = pneg %p127
      %p249 = pneg %p124
      %p250 = pneg %p148
      %p251 = pneg %p145
      %p252 = pneg %p174
      %p253 = pneg %p171
      %s254 = smul.u32 4, %s17
      %p255 = scmp.lt.s32.totalorder %s254, 7
      %s256 = scalar_select %p255, %s254, 7
      %s257 = smul.addr %s256, 8
      %s258 = scalar_lea.vmem %s6, %s257
      %s259 = smul.u32 4, %s17
      %p260 = scmp.lt.s32.totalorder %s259, 7
      %s261 = scalar_select %p260, %s259, 7
      %s262 = smul.addr %s261, 4
      %s263 = scalar_lea.vmem %s0, %s262
      %s264 = smul.u32 4, %s17
      %s265 = smul.u32 4, %s17
      %p266 = scmp.lt.s32.totalorder %s265, 7
      %s267 = scalar_select %p266, %s265, 7
      %s268 = smul.addr %s267, 8
      %s269 = scalar_lea.vmem %s1, %s268
      %s270 = smul.u32 4, %s17
      %s271 = smul.u32 4, %s17
      %p272 = scmp.lt.s32.totalorder %s271, 7
      %s273 = scalar_select %p272, %s271, 7
      %s274 = smul.addr %s273, 8
      %s275 = scalar_lea.vmem %s6, %s274
      %s276 = smul.u32 4, %s17
      %p278 = scmp.eq.s32.totalorder %s17, 0
      // Predicated region
      $region45: #{bilstm_module_forward.1} parent=43 // pred_check
        %p279 = pneg %p278
      $region46: #{bilstm_module_forward.1} parent=43 // pred_check_branch
        %281 = sbr.rel (%p279) target = $region48
      $region47: #{bilstm_module_forward.1} parent=43 // pred_region
        %282 = vst [vmem:[#allocation4] sm:$0xff] 0.0
        %283 = vst [vmem:[#allocation5] sm:$0xf] 0
      $region48: #{bilstm_module_forward.1} parent=43 // pred_fallthru
        _
      %v284 = vld [vmem:[%s263] sm:$0xf]
      %v285 = vld [vmem:[%s263 + $0x4] sm:$0xf]
      %v286 = vld [vmem:[%s263 + $0x8] sm:$0xf]
      %v287 = vld [vmem:[%s263 + $0xc] sm:$0xf]
      %v288 = vld [vmem:[%s2] sm:$0xff]
      %v289 = vld [vmem:[%s2 + $0x8] sm:$0xff]
      %v290 = vld [vmem:[%s2 + $0x10] sm:$0xff]
      %v291 = vld [vmem:[%s2 + $0x18] sm:$0xff]
      %v292 = vld [vmem:[%s2 + $0x20] sm:$0xff]
      %v293 = vld [vmem:[%s2 + $0x28] sm:$0xff]
      %v294 = vld [vmem:[%s2 + $0x30] sm:$0xff]
      %v295 = vld [vmem:[%s2 + $0x38] sm:$0xff]
      %v296 = vld [vmem:[%s4] sm:$0x3]
      %v298 = vperm.slane %v296, 0
      %v299 = vperm.slane %v296, 1
      %v306 = vunpack.c.l.b16 %v284
      %v307 = vunpack.c.l.b16 %v285
      %v308 = vunpack.c.l.b16 %v286
      %v309 = vunpack.c.l.b16 %v287
      %v310 = vpack.c.b16 %v307, %v306
      %v311 = vpack.c.b16 %v309, %v308
      %v320 = vunpack.c.l.b16 %v288
      %v321 = vunpack.c.h.b16 %v288
      %v322 = vunpack.c.l.b16 %v289
      %v323 = vunpack.c.h.b16 %v289
      %v324 = vunpack.c.l.b16 %v290
      %v325 = vunpack.c.h.b16 %v290
      %v326 = vunpack.c.l.b16 %v291
      %v327 = vunpack.c.h.b16 %v291
      %v328 = vunpack.c.l.b16 %v292
      %v329 = vunpack.c.h.b16 %v292
      %v330 = vunpack.c.l.b16 %v293
      %v331 = vunpack.c.h.b16 %v293
      %v332 = vunpack.c.l.b16 %v294
      %v333 = vunpack.c.h.b16 %v294
      %v334 = vunpack.c.l.b16 %v295
      %v335 = vunpack.c.h.b16 %v295
      %v336 = vpack.c.b16 %v322, %v320
      %v337 = vpack.c.b16 %v323, %v321
      %v338 = vpack.c.b16 %v326, %v324
      %v339 = vpack.c.b16 %v327, %v325
      %v340 = vpack.c.b16 %v330, %v328
      %v341 = vpack.c.b16 %v331, %v329
      %v342 = vpack.c.b16 %v334, %v332
      %v343 = vpack.c.b16 %v335, %v333
      %vm352 = vcmask 523264
      %v354 = vsel %vm352, %v310, 0
      %v357 = vsel %vm352, %v311, 0
      %359 = vmatpush.bf16.msra.mxu0 0
      %360 = vmatpush.bf16.msra.mxu0 0
      %361 = vmatpush.bf16.msra.mxu0 0
      %362 = vmatpush.bf16.msra.mxu0 0
      %363 = vmatpush.bf16.msra.mxu0 %v342
      %364 = vmatpush.bf16.msra.mxu0 %v340
      %365 = vmatpush.bf16.msra.mxu0 %v338
      %366 = vmatpush.bf16.msra.mxu0 %v336
      %367 = vmatmul.bf16.gmra.mxu0 %v354
      %v368 = vpop.f32.mrf.mxu0
      %v369 = vadd.f32 %v298, %v368
      %v370 = vpop.f32.mrf.mxu0
      %v371 = vadd.f32 %v298, %v370
      %372 = vmatmul.bf16.gmra.mxu0 %v357
      %v373 = vpop.f32.mrf.mxu0
      %v374 = vadd.f32 %v298, %v373
      %v375 = vpop.f32.mrf.mxu0
      %v376 = vadd.f32 %v298, %v375
      %377 = vdwg.mxu0
      %378 = vmatpush.bf16.msra.mxu0 0
      %379 = vmatpush.bf16.msra.mxu0 0
      %380 = vmatpush.bf16.msra.mxu0 0
      %381 = vmatpush.bf16.msra.mxu0 0
      %382 = vmatpush.bf16.msra.mxu0 %v343
      %383 = vmatpush.bf16.msra.mxu0 %v341
      %384 = vmatpush.bf16.msra.mxu0 %v339
      %385 = vmatpush.bf16.msra.mxu0 %v337
      %386 = vmatmul.bf16.gmra.mxu0 %v354
      %v387 = vpop.f32.mrf.mxu0
      %v388 = vadd.f32 %v299, %v387
      %v389 = vpop.f32.mrf.mxu0
      %v390 = vadd.f32 %v299, %v389
      %391 = vmatmul.bf16.gmra.mxu0 %v357
      %v392 = vpop.f32.mrf.mxu0
      %v393 = vadd.f32 %v299, %v392
      %v394 = vpop.f32.mrf.mxu0
      %v395 = vadd.f32 %v299, %v394
      %396 = vdwg.mxu0
      %397 = vst [vmem:[#allocation2] sm:$0xff] %v369
      %398 = vst [vmem:[#allocation2 + $0x8] sm:$0xff] %v388
      %399 = vst [vmem:[#allocation2 + $0x10] sm:$0xff] %v371
      %400 = vst [vmem:[#allocation2 + $0x18] sm:$0xff] %v390
      %401 = vst [vmem:[#allocation2 + $0x20] sm:$0xff] %v374
      %402 = vst [vmem:[#allocation2 + $0x28] sm:$0xff] %v393
      %403 = vst [vmem:[#allocation2 + $0x30] sm:$0xff] %v376
      %404 = vst [vmem:[#allocation2 + $0x38] sm:$0xff] %v395
      %v405 = vld [vmem:[%s3] sm:$0xff]
      %v406 = vld [vmem:[%s3 + $0x8] sm:$0xff]
      %v407 = vld [vmem:[%s3 + $0x10] sm:$0xff]
      %v408 = vld [vmem:[%s3 + $0x18] sm:$0xff]
      %v409 = vld [vmem:[%s3 + $0x20] sm:$0xff]
      %v410 = vld [vmem:[%s3 + $0x28] sm:$0xff]
      %v411 = vld [vmem:[%s3 + $0x30] sm:$0xff]
      %v412 = vld [vmem:[%s3 + $0x38] sm:$0xff]
      %v413 = vld [vmem:[%s3 + $0x40] sm:$0xff]
      %v414 = vld [vmem:[%s3 + $0x48] sm:$0xff]
      %v415 = vld [vmem:[%s3 + $0x50] sm:$0xff]
      %v416 = vld [vmem:[%s3 + $0x58] sm:$0xff]
      %v417 = vld [vmem:[%s3 + $0x60] sm:$0xff]
      %v418 = vld [vmem:[%s3 + $0x68] sm:$0xff]
      %v419 = vld [vmem:[%s3 + $0x70] sm:$0xff]
      %v420 = vld [vmem:[%s3 + $0x78] sm:$0xff]
      %s421 = smul.u32 0, 2
      %s422 = smul.addr %s421, 8
      %s423 = scalar_lea.vmem [#allocation2], %s422
      %v424 = vld [vmem:[%s423] sm:$0xff]
      %v425 = vld [vmem:[%s423 + $0x8] sm:$0xff]
      %v426 = vld [vmem:[#allocation5] sm:$0xf]
      %v443 = vunpack.c.l.b16 %v405
      %v444 = vunpack.c.h.b16 %v405
      %v445 = vunpack.c.l.b16 %v406
      %v446 = vunpack.c.h.b16 %v406
      %v447 = vunpack.c.l.b16 %v407
      %v448 = vunpack.c.h.b16 %v407
      %v449 = vunpack.c.l.b16 %v408
      %v450 = vunpack.c.h.b16 %v408
      %v451 = vunpack.c.l.b16 %v409
      %v452 = vunpack.c.h.b16 %v409
      %v453 = vunpack.c.l.b16 %v410
      %v454 = vunpack.c.h.b16 %v410
      %v455 = vunpack.c.l.b16 %v411
      %v456 = vunpack.c.h.b16 %v411
      %v457 = vunpack.c.l.b16 %v412
      %v458 = vunpack.c.h.b16 %v412
      %v459 = vunpack.c.l.b16 %v413
      %v460 = vunpack.c.h.b16 %v413
      %v461 = vunpack.c.l.b16 %v414
      %v462 = vunpack.c.h.b16 %v414
      %v463 = vunpack.c.l.b16 %v415
      %v464 = vunpack.c.h.b16 %v415
      %v465 = vunpack.c.l.b16 %v416
      %v466 = vunpack.c.h.b16 %v416
      %v467 = vunpack.c.l.b16 %v417
      %v468 = vunpack.c.h.b16 %v417
      %v469 = vunpack.c.l.b16 %v418
      %v470 = vunpack.c.h.b16 %v418
      %v471 = vunpack.c.l.b16 %v419
      %v472 = vunpack.c.h.b16 %v419
      %v473 = vunpack.c.l.b16 %v420
      %v474 = vunpack.c.h.b16 %v420
      %v475 = vpack.c.b16 %v445, %v443
      %v476 = vpack.c.b16 %v446, %v444
      %v477 = vpack.c.b16 %v449, %v447
      %v478 = vpack.c.b16 %v450, %v448
      %v479 = vpack.c.b16 %v453, %v451
      %v480 = vpack.c.b16 %v454, %v452
      %v481 = vpack.c.b16 %v457, %v455
      %v482 = vpack.c.b16 %v458, %v456
      %v483 = vpack.c.b16 %v461, %v459
      %v484 = vpack.c.b16 %v462, %v460
      %v485 = vpack.c.b16 %v465, %v463
      %v486 = vpack.c.b16 %v466, %v464
      %v487 = vpack.c.b16 %v469, %v467
      %v488 = vpack.c.b16 %v470, %v468
      %v489 = vpack.c.b16 %v473, %v471
      %v490 = vpack.c.b16 %v474, %v472
      %507 = vmatpush.bf16.msra.mxu0 %v489
      %508 = vmatpush.bf16.msra.mxu0 %v487
      %509 = vmatpush.bf16.msra.mxu0 %v485
      %510 = vmatpush.bf16.msra.mxu0 %v483
      %511 = vmatpush.bf16.msra.mxu0 %v481
      %512 = vmatpush.bf16.msra.mxu0 %v479
      %513 = vmatpush.bf16.msra.mxu0 %v477
      %514 = vmatpush.bf16.msra.mxu0 %v475
      %515 = vmatmul.bf16.gmra.mxu0 %v426
      %v516 = vpop.f32.mrf.mxu0
      %v517 = vadd.f32 0.0, %v516
      %v518 = vpop.f32.mrf.mxu0
      %519 = vdwg.mxu0
      %520 = vmatpush.bf16.msra.mxu0 %v490
      %521 = vmatpush.bf16.msra.mxu0 %v488
      %522 = vmatpush.bf16.msra.mxu0 %v486
      %523 = vmatpush.bf16.msra.mxu0 %v484
      %524 = vmatpush.bf16.msra.mxu0 %v482
      %525 = vmatpush.bf16.msra.mxu0 %v480
      %526 = vmatpush.bf16.msra.mxu0 %v478
      %527 = vmatpush.bf16.msra.mxu0 %v476
      %528 = vmatmul.bf16.gmra.mxu0 %v426
      %v529 = vpop.f32.mrf.mxu0
      %v530 = vadd.f32 0.0, %v529
      %v531 = vpop.f32.mrf.mxu0
      %532 = vdwg.mxu0
      %v533 = vadd.f32 %v424, %v517
      %v534 = vadd.f32 %v425, %v530
      %v535 = vxor.u32 %v533, 2147483648
      %v536 = vxor.u32 %v534, 2147483648
      %v537 = vmul.f32 %v535, 1.442695
      %v538 = vpow.pop %v537
      %v539 = vmul.f32 %v536, 1.442695
      %v540 = vpow.pop %v539
      %v541 = vadd.f32 %v538, 1.0
      %v542 = vadd.f32 %v540, 1.0
      %v543 = vrcp.pop %v541
      %v544 = vmul.f32 %v541, %v543
      %v545 = vsub.f32 1.0, %v544
      %v546 = vmul.f32 %v543, %v545
      %v547 = vadd.f32 %v543, %v546
      %vm548 = vweird.f32 %v541
      %vm549 = vweird.f32 %v543
      %vm550 = vmor %vm548, %vm549
      %v551 = vsel %vm550, %v543, %v547
      %v552 = vand.u32 2147483647, %v541
      %vm553 = vcmp.eq.f32.partialorder %v552, 8.507059e+37
      %v554 = vand.u32 %v541, 2147483648
      %v555 = vor.u32 1.1754944e-38, %v554
      %v556 = vsel %vm553, %v555, %v551
      %v557 = vmul.f32 1.0, %v556
      %v558 = vrcp.pop %v542
      %v559 = vmul.f32 %v542, %v558
      %v560 = vsub.f32 1.0, %v559
      %v561 = vmul.f32 %v558, %v560
      %v562 = vadd.f32 %v558, %v561
      %vm563 = vweird.f32 %v542
      %vm564 = vweird.f32 %v558
      %vm565 = vmor %vm563, %vm564
      %v566 = vsel %vm565, %v558, %v562
      %v567 = vand.u32 2147483647, %v542
      %vm568 = vcmp.eq.f32.partialorder %v567, 8.507059e+37
      %v569 = vand.u32 %v542, 2147483648
      %v570 = vor.u32 1.1754944e-38, %v569
      %v571 = vsel %vm568, %v570, %v566
      %v572 = vmul.f32 1.0, %v571
      %v573 = vtanh.pop %v534
      %v574 = vld [vmem:[#allocation4] sm:$0xff]
      %v575 = vmul.f32 %v557, %v574
      %577 = vrot.lane.b32.xlu0 %v573, 64
      %v578 = vpop.permute.xlu0 %577
      %v580 = vmul.f32 %v557, %v578
      %582 = vrot.lane.b32.xlu0 %v580, 64
      %v583 = vpop.permute.xlu0 %582
      %v585 = vadd.f32 %v575, %v583
      %v586 = vtanh.pop %v585
      %588 = vrot.lane.b32.xlu0 %v586, 64
      %v589 = vpop.permute.xlu0 %588
      %v591 = vmul.f32 %v572, %v589
      %v592 = vsel %vm352, %v591, %v585
      %v593 = vld [vmem:[%s269] sm:$0xff]
      %vm594 = vcmp.gt.f32.partialorder %v593, 0.5
      %v595 = vsel %vm594, 1, 0
      %596 = vset.pattern.permute.xlu0 0
      %597 = vperm.xlu0 %596, %v595
      %v598 = vpop.permute.xlu0 %597
      %vm599 = vcmp.eq.s32.totalorder %v598, 1
      %v600 = vsel %vm599, %v592, %v574
      %601 = vst [vmem:[#allocation4] sm:$0xff] %v600
      %v602 = vpack.c.bf16 %v600, %v600
      %603 = vst [vmem:[#allocation5] sm:$0xf] %v602
      %v604 = vsel %vm599, %v592, 0.0
      %605 = vst [vmem:[#allocation3] sm:$0xff] %v604
      %s606 = smul.u32 1, 2
      %s607 = smul.addr %s606, 8
      %s608 = scalar_lea.vmem [#allocation2], %s607
      %v609 = vld [vmem:[%s608] sm:$0xff]
      %v610 = vld [vmem:[%s608 + $0x8] sm:$0xff]
      %v611 = vld [vmem:[#allocation5] sm:$0xf]
      %612 = vmatpush.bf16.msra.mxu0 %v489
      %613 = vmatpush.bf16.msra.mxu0 %v487
      %614 = vmatpush.bf16.msra.mxu0 %v485
      %615 = vmatpush.bf16.msra.mxu0 %v483
      %616 = vmatpush.bf16.msra.mxu0 %v481
      %617 = vmatpush.bf16.msra.mxu0 %v479
      %618 = vmatpush.bf16.msra.mxu0 %v477
      %619 = vmatpush.bf16.msra.mxu0 %v475
      %620 = vmatmul.bf16.gmra.mxu0 %v611
      %v621 = vpop.f32.mrf.mxu0
      %v622 = vadd.f32 0.0, %v621
      %v623 = vpop.f32.mrf.mxu0
      %624 = vdwg.mxu0
      %625 = vmatpush.bf16.msra.mxu0 %v490
      %626 = vmatpush.bf16.msra.mxu0 %v488
      %627 = vmatpush.bf16.msra.mxu0 %v486
      %628 = vmatpush.bf16.msra.mxu0 %v484
      %629 = vmatpush.bf16.msra.mxu0 %v482
      %630 = vmatpush.bf16.msra.mxu0 %v480
      %631 = vmatpush.bf16.msra.mxu0 %v478
      %632 = vmatpush.bf16.msra.mxu0 %v476
      %633 = vmatmul.bf16.gmra.mxu0 %v611
      %v634 = vpop.f32.mrf.mxu0
      %v635 = vadd.f32 0.0, %v634
      %v636 = vpop.f32.mrf.mxu0
      %637 = vdwg.mxu0
      %v638 = vadd.f32 %v609, %v622
      %v639 = vadd.f32 %v610, %v635
      %v640 = vxor.u32 %v638, 2147483648
      %v641 = vxor.u32 %v639, 2147483648
      %v642 = vmul.f32 %v640, 1.442695
      %v643 = vpow.pop %v642
      %v644 = vmul.f32 %v641, 1.442695
      %v645 = vpow.pop %v644
      %v646 = vadd.f32 %v643, 1.0
      %v647 = vadd.f32 %v645, 1.0
      %v648 = vrcp.pop %v646
      %v649 = vmul.f32 %v646, %v648
      %v650 = vsub.f32 1.0, %v649
      %v651 = vmul.f32 %v648, %v650
      %v652 = vadd.f32 %v648, %v651
      %vm653 = vweird.f32 %v646
      %vm654 = vweird.f32 %v648
      %vm655 = vmor %vm653, %vm654
      %v656 = vsel %vm655, %v648, %v652
      %v657 = vand.u32 2147483647, %v646
      %vm658 = vcmp.eq.f32.partialorder %v657, 8.507059e+37
      %v659 = vand.u32 %v646, 2147483648
      %v660 = vor.u32 1.1754944e-38, %v659
      %v661 = vsel %vm658, %v660, %v656
      %v662 = vmul.f32 1.0, %v661
      %v663 = vrcp.pop %v647
      %v664 = vmul.f32 %v647, %v663
      %v665 = vsub.f32 1.0, %v664
      %v666 = vmul.f32 %v663, %v665
      %v667 = vadd.f32 %v663, %v666
      %vm668 = vweird.f32 %v647
      %vm669 = vweird.f32 %v663
      %vm670 = vmor %vm668, %vm669
      %v671 = vsel %vm670, %v663, %v667
      %v672 = vand.u32 2147483647, %v647
      %vm673 = vcmp.eq.f32.partialorder %v672, 8.507059e+37
      %v674 = vand.u32 %v647, 2147483648
      %v675 = vor.u32 1.1754944e-38, %v674
      %v676 = vsel %vm673, %v675, %v671
      %v677 = vmul.f32 1.0, %v676
      %v678 = vtanh.pop %v639
      %v679 = vld [vmem:[#allocation4] sm:$0xff]
      %v680 = vmul.f32 %v662, %v679
      %682 = vrot.lane.b32.xlu0 %v678, 64
      %v683 = vpop.permute.xlu0 %682
      %v685 = vmul.f32 %v662, %v683
      %687 = vrot.lane.b32.xlu0 %v685, 64
      %v688 = vpop.permute.xlu0 %687
      %v690 = vadd.f32 %v680, %v688
      %v691 = vtanh.pop %v690
      %693 = vrot.lane.b32.xlu0 %v691, 64
      %v694 = vpop.permute.xlu0 %693
      %v696 = vmul.f32 %v677, %v694
      %v697 = vsel %vm352, %v696, %v690
      %s698 = scalar_lea.vmem %s269, 8
      %v699 = vld [vmem:[%s698] sm:$0xff]
      %vm700 = vcmp.gt.f32.partialorder %v699, 0.5
      %v701 = vsel %vm700, 1, 0
      %702 = vset.pattern.permute.xlu0 0
      %703 = vperm.xlu0 %702, %v701
      %v704 = vpop.permute.xlu0 %703
      %vm705 = vcmp.eq.s32.totalorder %v704, 1
      %v706 = vsel %vm705, %v697, %v679
      %707 = vst [vmem:[#allocation4] sm:$0xff] %v706
      %v708 = vpack.c.bf16 %v706, %v706
      %709 = vst [vmem:[#allocation5] sm:$0xf] %v708
      %v710 = vsel %vm705, %v697, 0.0
      %s711 = scalar_lea.vmem [#allocation3], 8
      %712 = vst [vmem:[%s711] sm:$0xff] %v710
      %s713 = smul.u32 2, 2
      %s714 = smul.addr %s713, 8
      %s715 = scalar_lea.vmem [#allocation2], %s714
      %v716 = vld [vmem:[%s715] sm:$0xff]
      %v717 = vld [vmem:[%s715 + $0x8] sm:$0xff]
      %v718 = vld [vmem:[#allocation5] sm:$0xf]
      %719 = vmatpush.bf16.msra.mxu0 %v489
      %720 = vmatpush.bf16.msra.mxu0 %v487
      %721 = vmatpush.bf16.msra.mxu0 %v485
      %722 = vmatpush.bf16.msra.mxu0 %v483
      %723 = vmatpush.bf16.msra.mxu0 %v481
      %724 = vmatpush.bf16.msra.mxu0 %v479
      %725 = vmatpush.bf16.msra.mxu0 %v477
      %726 = vmatpush.bf16.msra.mxu0 %v475
      %727 = vmatmul.bf16.gmra.mxu0 %v718
      %v728 = vpop.f32.mrf.mxu0
      %v729 = vadd.f32 0.0, %v728
      %v730 = vpop.f32.mrf.mxu0
      %731 = vdwg.mxu0
      %732 = vmatpush.bf16.msra.mxu0 %v490
      %733 = vmatpush.bf16.msra.mxu0 %v488
      %734 = vmatpush.bf16.msra.mxu0 %v486
      %735 = vmatpush.bf16.msra.mxu0 %v484
      %736 = vmatpush.bf16.msra.mxu0 %v482
      %737 = vmatpush.bf16.msra.mxu0 %v480
      %738 = vmatpush.bf16.msra.mxu0 %v478
      %739 = vmatpush.bf16.msra.mxu0 %v476
      %740 = vmatmul.bf16.gmra.mxu0 %v718
      %v741 = vpop.f32.mrf.mxu0
      %v742 = vadd.f32 0.0, %v741
      %v743 = vpop.f32.mrf.mxu0
      %744 = vdwg.mxu0
      %v745 = vadd.f32 %v716, %v729
      %v746 = vadd.f32 %v717, %v742
      %v747 = vxor.u32 %v745, 2147483648
      %v748 = vxor.u32 %v746, 2147483648
      %v749 = vmul.f32 %v747, 1.442695
      %v750 = vpow.pop %v749
      %v751 = vmul.f32 %v748, 1.442695
      %v752 = vpow.pop %v751
      %v753 = vadd.f32 %v750, 1.0
      %v754 = vadd.f32 %v752, 1.0
      %v755 = vrcp.pop %v753
      %v756 = vmul.f32 %v753, %v755
      %v757 = vsub.f32 1.0, %v756
      %v758 = vmul.f32 %v755, %v757
      %v759 = vadd.f32 %v755, %v758
      %vm760 = vweird.f32 %v753
      %vm761 = vweird.f32 %v755
      %vm762 = vmor %vm760, %vm761
      %v763 = vsel %vm762, %v755, %v759
      %v764 = vand.u32 2147483647, %v753
      %vm765 = vcmp.eq.f32.partialorder %v764, 8.507059e+37
      %v766 = vand.u32 %v753, 2147483648
      %v767 = vor.u32 1.1754944e-38, %v766
      %v768 = vsel %vm765, %v767, %v763
      %v769 = vmul.f32 1.0, %v768
      %v770 = vrcp.pop %v754
      %v771 = vmul.f32 %v754, %v770
      %v772 = vsub.f32 1.0, %v771
      %v773 = vmul.f32 %v770, %v772
      %v774 = vadd.f32 %v770, %v773
      %vm775 = vweird.f32 %v754
      %vm776 = vweird.f32 %v770
      %vm777 = vmor %vm775, %vm776
      %v778 = vsel %vm777, %v770, %v774
      %v779 = vand.u32 2147483647, %v754
      %vm780 = vcmp.eq.f32.partialorder %v779, 8.507059e+37
      %v781 = vand.u32 %v754, 2147483648
      %v782 = vor.u32 1.1754944e-38, %v781
      %v783 = vsel %vm780, %v782, %v778
      %v784 = vmul.f32 1.0, %v783
      %v785 = vtanh.pop %v746
      %v786 = vld [vmem:[#allocation4] sm:$0xff]
      %v787 = vmul.f32 %v769, %v786
      %789 = vrot.lane.b32.xlu0 %v785, 64
      %v790 = vpop.permute.xlu0 %789
      %v792 = vmul.f32 %v769, %v790
      %794 = vrot.lane.b32.xlu0 %v792, 64
      %v795 = vpop.permute.xlu0 %794
      %v797 = vadd.f32 %v787, %v795
      %v798 = vtanh.pop %v797
      %800 = vrot.lane.b32.xlu0 %v798, 64
      %v801 = vpop.permute.xlu0 %800
      %v803 = vmul.f32 %v784, %v801
      %v804 = vsel %vm352, %v803, %v797
      %s805 = scalar_lea.vmem %s269, 16
      %v806 = vld [vmem:[%s805] sm:$0xff]
      %vm807 = vcmp.gt.f32.partialorder %v806, 0.5
      %v808 = vsel %vm807, 1, 0
      %809 = vset.pattern.permute.xlu0 0
      %810 = vperm.xlu0 %809, %v808
      %v811 = vpop.permute.xlu0 %810
      %vm812 = vcmp.eq.s32.totalorder %v811, 1
      %v813 = vsel %vm812, %v804, %v786
      %814 = vst [vmem:[#allocation4] sm:$0xff] %v813
      %v815 = vpack.c.bf16 %v813, %v813
      %816 = vst [vmem:[#allocation5] sm:$0xf] %v815
      %v817 = vsel %vm812, %v804, 0.0
      %s818 = scalar_lea.vmem [#allocation3], 16
      %819 = vst [vmem:[%s818] sm:$0xff] %v817
      %s820 = smul.u32 3, 2
      %s821 = smul.addr %s820, 8
      %s822 = scalar_lea.vmem [#allocation2], %s821
      %v823 = vld [vmem:[%s822] sm:$0xff]
      %v824 = vld [vmem:[%s822 + $0x8] sm:$0xff]
      %v825 = vld [vmem:[#allocation5] sm:$0xf]
      %826 = vmatpush.bf16.msra.mxu0 %v489
      %827 = vmatpush.bf16.msra.mxu0 %v487
      %828 = vmatpush.bf16.msra.mxu0 %v485
      %829 = vmatpush.bf16.msra.mxu0 %v483
      %830 = vmatpush.bf16.msra.mxu0 %v481
      %831 = vmatpush.bf16.msra.mxu0 %v479
      %832 = vmatpush.bf16.msra.mxu0 %v477
      %833 = vmatpush.bf16.msra.mxu0 %v475
      %834 = vmatmul.bf16.gmra.mxu0 %v825
      %v835 = vpop.f32.mrf.mxu0
      %v836 = vadd.f32 0.0, %v835
      %v837 = vpop.f32.mrf.mxu0
      %838 = vdwg.mxu0
      %839 = vmatpush.bf16.msra.mxu0 %v490
      %840 = vmatpush.bf16.msra.mxu0 %v488
      %841 = vmatpush.bf16.msra.mxu0 %v486
      %842 = vmatpush.bf16.msra.mxu0 %v484
      %843 = vmatpush.bf16.msra.mxu0 %v482
      %844 = vmatpush.bf16.msra.mxu0 %v480
      %845 = vmatpush.bf16.msra.mxu0 %v478
      %846 = vmatpush.bf16.msra.mxu0 %v476
      %847 = vmatmul.bf16.gmra.mxu0 %v825
      %v848 = vpop.f32.mrf.mxu0
      %v849 = vadd.f32 0.0, %v848
      %v850 = vpop.f32.mrf.mxu0
      %851 = vdwg.mxu0
      %v852 = vadd.f32 %v823, %v836
      %v853 = vadd.f32 %v824, %v849
      %v854 = vxor.u32 %v852, 2147483648
      %v855 = vxor.u32 %v853, 2147483648
      %v856 = vmul.f32 %v854, 1.442695
      %v857 = vpow.pop %v856
      %v858 = vmul.f32 %v855, 1.442695
      %v859 = vpow.pop %v858
      %v860 = vadd.f32 %v857, 1.0
      %v861 = vadd.f32 %v859, 1.0
      %v862 = vrcp.pop %v860
      %v863 = vmul.f32 %v860, %v862
      %v864 = vsub.f32 1.0, %v863
      %v865 = vmul.f32 %v862, %v864
      %v866 = vadd.f32 %v862, %v865
      %vm867 = vweird.f32 %v860
      %vm868 = vweird.f32 %v862
      %vm869 = vmor %vm867, %vm868
      %v870 = vsel %vm869, %v862, %v866
      %v871 = vand.u32 2147483647, %v860
      %vm872 = vcmp.eq.f32.partialorder %v871, 8.507059e+37
      %v873 = vand.u32 %v860, 2147483648
      %v874 = vor.u32 1.1754944e-38, %v873
      %v875 = vsel %vm872, %v874, %v870
      %v876 = vmul.f32 1.0, %v875
      %v877 = vrcp.pop %v861
      %v878 = vmul.f32 %v861, %v877
      %v879 = vsub.f32 1.0, %v878
      %v880 = vmul.f32 %v877, %v879
      %v881 = vadd.f32 %v877, %v880
      %vm882 = vweird.f32 %v861
      %vm883 = vweird.f32 %v877
      %vm884 = vmor %vm882, %vm883
      %v885 = vsel %vm884, %v877, %v881
      %v886 = vand.u32 2147483647, %v861
      %vm887 = vcmp.eq.f32.partialorder %v886, 8.507059e+37
      %v888 = vand.u32 %v861, 2147483648
      %v889 = vor.u32 1.1754944e-38, %v888
      %v890 = vsel %vm887, %v889, %v885
      %v891 = vmul.f32 1.0, %v890
      %v892 = vtanh.pop %v853
      %v893 = vld [vmem:[#allocation4] sm:$0xff]
      %v894 = vmul.f32 %v876, %v893
      %896 = vrot.lane.b32.xlu0 %v892, 64
      %v897 = vpop.permute.xlu0 %896
      %v899 = vmul.f32 %v876, %v897
      %901 = vrot.lane.b32.xlu0 %v899, 64
      %v902 = vpop.permute.xlu0 %901
      %v904 = vadd.f32 %v894, %v902
      %v905 = vtanh.pop %v904
      %907 = vrot.lane.b32.xlu0 %v905, 64
      %v908 = vpop.permute.xlu0 %907
      %v910 = vmul.f32 %v891, %v908
      %v911 = vsel %vm352, %v910, %v904
      %s912 = scalar_lea.vmem %s269, 24
      %v913 = vld [vmem:[%s912] sm:$0xff]
      %vm914 = vcmp.gt.f32.partialorder %v913, 0.5
      %v915 = vsel %vm914, 1, 0
      %916 = vset.pattern.permute.xlu0 0
      %917 = vperm.xlu0 %916, %v915
      %v918 = vpop.permute.xlu0 %917
      %vm919 = vcmp.eq.s32.totalorder %v918, 1
      %v920 = vsel %vm919, %v911, %v893
      %921 = vst [vmem:[#allocation4] sm:$0xff] %v920
      %v922 = vpack.c.bf16 %v920, %v920
      %923 = vst [vmem:[#allocation5] sm:$0xf] %v922
      %v924 = vsel %vm919, %v911, 0.0
      %s925 = scalar_lea.vmem [#allocation3], 24
      %926 = vst [vmem:[%s925] sm:$0xff] %v924
      %v927 = vld [vmem:[#allocation3] sm:$0xff]
      %v928 = vld [vmem:[#allocation3 + $0x8] sm:$0xff]
      %v929 = vld [vmem:[#allocation3 + $0x10] sm:$0xff]
      %v930 = vld [vmem:[#allocation3 + $0x18] sm:$0xff]
      %v931 = vpack.c.bf16 %v928, %v927
      %v932 = vpack.c.bf16 %v930, %v929
      %v933 = vld [vmem:[%s5] sm:$0xf]
      %v934 = vld [vmem:[%s5 + $0x4] sm:$0xf]
      %v935 = vld [vmem:[%s5 + $0x8] sm:$0xf]
      %v936 = vld [vmem:[%s5 + $0xc] sm:$0xf]
      %v937 = vld [vmem:[%s5 + $0x10] sm:$0xf]
      %v938 = vld [vmem:[%s5 + $0x14] sm:$0xf]
      %v939 = vld [vmem:[%s5 + $0x18] sm:$0xf]
      %v940 = vld [vmem:[%s5 + $0x1c] sm:$0xf]
      %v941 = vld [vmem:[%s5 + $0x20] sm:$0xf]
      %v942 = vld [vmem:[%s5 + $0x24] sm:$0xf]
      %v943 = vld [vmem:[%s5 + $0x28] sm:$0xf]
      %v944 = vld [vmem:[%s5 + $0x2c] sm:$0xf]
      %v945 = vld [vmem:[%s5 + $0x30] sm:$0xf]
      %v946 = vld [vmem:[%s5 + $0x34] sm:$0xf]
      %v947 = vld [vmem:[%s5 + $0x38] sm:$0xf]
      %v948 = vld [vmem:[%s5 + $0x3c] sm:$0xf]
      %v965 = vunpack.c.l.b16 %v933
      %v966 = vunpack.c.l.b16 %v934
      %v967 = vunpack.c.l.b16 %v935
      %v968 = vunpack.c.l.b16 %v936
      %v969 = vunpack.c.l.b16 %v937
      %v970 = vunpack.c.l.b16 %v938
      %v971 = vunpack.c.l.b16 %v939
      %v972 = vunpack.c.l.b16 %v940
      %v973 = vunpack.c.l.b16 %v941
      %v974 = vunpack.c.l.b16 %v942
      %v975 = vunpack.c.l.b16 %v943
      %v976 = vunpack.c.l.b16 %v944
      %v977 = vunpack.c.l.b16 %v945
      %v978 = vunpack.c.l.b16 %v946
      %v979 = vunpack.c.l.b16 %v947
      %v980 = vunpack.c.l.b16 %v948
      %v981 = vpack.c.b16 %v966, %v965
      %v982 = vpack.c.b16 %v968, %v967
      %v983 = vpack.c.b16 %v970, %v969
      %v984 = vpack.c.b16 %v972, %v971
      %v985 = vpack.c.b16 %v974, %v973
      %v986 = vpack.c.b16 %v976, %v975
      %v987 = vpack.c.b16 %v978, %v977
      %v988 = vpack.c.b16 %v980, %v979
      %997 = vmatpush.bf16.msra.mxu0 %v988
      %998 = vmatpush.bf16.msra.mxu0 %v987
      %999 = vmatpush.bf16.msra.mxu0 %v986
      %1000 = vmatpush.bf16.msra.mxu0 %v985
      %1001 = vmatpush.bf16.msra.mxu0 %v984
      %1002 = vmatpush.bf16.msra.mxu0 %v983
      %1003 = vmatpush.bf16.msra.mxu0 %v982
      %1004 = vmatpush.bf16.msra.mxu0 %v981
      %1005 = vmatmul.bf16.gmra.mxu0 %v931
      %v1006 = vpop.f32.mrf.mxu0
      %v1007 = vadd.f32 0.0, %v1006
      %v1008 = vpop.f32.mrf.mxu0
      %v1009 = vadd.f32 0.0, %v1008
      %1010 = vmatmul.bf16.gmra.mxu0 %v932
      %v1011 = vpop.f32.mrf.mxu0
      %v1012 = vadd.f32 0.0, %v1011
      %v1013 = vpop.f32.mrf.mxu0
      %v1014 = vadd.f32 0.0, %v1013
      %1015 = vdwg.mxu0
      %1016 = vst.msk [vmem:[%s275] sm:$0xff] %vm352, %v1007
      %1017 = vst.msk [vmem:[%s275 + $0x8] sm:$0xff] %vm352, %v1009
      %1018 = vst.msk [vmem:[%s275 + $0x10] sm:$0xff] %vm352, %v1012
      %1019 = vst.msk [vmem:[%s275 + $0x18] sm:$0xff] %vm352, %v1014
      %s1020 = smul.u32 4, %s17
      %p1021 = scmp.lt.s32.totalorder %s1020, 7
      %s1022 = scalar_select %p1021, %s1020, 7
      %s1023 = smul.addr %s1022, 8
      %s1024 = scalar_lea.vmem %s6, %s1023
      // Predicated region
      $region49: #{bilstm_module_forward.1} parent=43 // pred_check
        %p1025 = pneg %p171
      $region50: #{bilstm_module_forward.1} parent=43 // pred_check_branch
        %1027 = sbr.rel (%p1025) target = $region52
      $region51: #{bilstm_module_forward.1} parent=43 // pred_region
        %s1028 = smul.u32 4, %s17
      $region52: #{bilstm_module_forward.1} parent=43 // pred_fallthru
        _
    $region44: #{bilstm_module_forward.1} parent=5 // pred_fallthru
      _
    %p1029 = scmp.le.s32.totalorder 2, %s12
    // Predicated region
    $region53: #{bilstm_module_forward.1} parent=5 // pred_check
      %p1030 = pneg %p1029
    $region54: #{bilstm_module_forward.1} parent=5 // pred_check_branch
      %1032 = sbr.rel (%p1030) target = $region56
    $region55: #{bilstm_module_forward.1} parent=5 // pred_region
      %s1033 = ssub.s32 %s12, 2
      // Predicated region
      $region57: #{bilstm_module_forward.1} parent=55 // pred_check
        %p1034 = pneg %p177
      $region58: #{bilstm_module_forward.1} parent=55 // pred_check_branch
        %1036 = sbr.rel (%p1034) target = $region60
      $region59: #{bilstm_module_forward.1} parent=55 // pred_region
        %s1037 = smul.u32 4, %s18
        %p1038 = scmp.lt.s32.totalorder %s1037, 7
        %s1039 = scalar_select %p1038, %s1037, 7
        %s1040 = smul.addr %s1039, 8
        %s1041 = scalar_lea.vmem %s6, %s1040
      $region60: #{bilstm_module_forward.1} parent=55 // pred_fallthru
        _
    $region56: #{bilstm_module_forward.1} parent=5 // pred_fallthru
      _
  $region6: #{bilstm_module_forward.1} parent=0 // loop_footer
    %s16 = sadd.s32 1, %s12
  $region7: #{bilstm_module_forward.1} parent=0 // loop_footer_branch
    %11 = sbr.rel target = $region3
  $region8: #{bilstm_module_forward.1} parent=0 // loop_exit
    _

</llo_original>
